<compile_context>
chip_gen: v5e
topology: v5e:2x2
jax: 0.10.0
libtpu: 0.0.40
codegen_flags: <defaults>
</compile_context>

<pallas_src>
import functools
import math

import jax
import jax.numpy as jnp
from jax import lax
from jax.experimental import pallas as pl
from jax.experimental.pallas import tpu as pltpu

SIG_LEVEL = 2
SIGSIZE = 6          # iisignature.siglength(2, 2) == 2 + 4
KEPT = 5             # carried components: [a1 | s11 | s12 | s21 | state]


def _round_up(x, m):
    return (x + m - 1) // m * m


def _largest_divisor_leq(n, cap):
    for d in range(min(n, cap), 0, -1):
        if n % d == 0:
            return d
    return 1


def _recurrent_sig_chunk_kernel(xh_ref, u_ref, a20_ref, tau_ref, c0_ref,
                                raw_ref, carry_ref, *, n_pad, t_chunk, mm_dtype):
    """One grid step == t_chunk timesteps of the recurrence for one batch block.

    xh_ref   : (t_chunk, Bblk, n_pad) streamed   x@W + Wb + Ub + hoisted a2/s22 terms
    u_ref    : (5*n_pad, n_pad)       resident   merged [U_a1;U_s11;U_s12;U_s21;U_state]
    a20_ref  : (Bblk, n_pad)          resident   initial a2 (for the s21 update)
    tau_ref  : (1, 1) SMEM                       exp(log_timelapse)
    c0_ref   : (Bblk, 5*n_pad)        resident   initial carry
    raw_ref  : (t_chunk, Bblk, n_pad) per-chunk raw outputs
    carry_ref: (Bblk, 5*n_pad)        VMEM-resident accumulator, layout
                                      [a1|s11|s12|s21|state]
    """
    n = n_pad
    chunk = pl.program_id(1)

    @pl.when(chunk == 0)
    def _init():
        carry_ref[...] = c0_ref[...]

    tau = tau_ref[0, 0]
    # a2 is data independent: a2_prev(global step) = a2_0 + step * tau.
    step_base = (chunk * t_chunk).astype(jnp.float32)
    a2_start = a20_ref[...] + step_base * tau

    def body(k, loop_carry):
        carry, a2_prev = loop_carry                      # (B, 5n) f32, (B, n) f32
        a1 = carry[:, 0 * n:1 * n]
        s11 = carry[:, 1 * n:2 * n]
        s12 = carry[:, 2 * n:3 * n]
        s21 = carry[:, 3 * n:4 * n]
        state = carry[:, 4 * n:5 * n]

        # Single MXU dot per timestep (bf16 operands, f32 accumulation).
        raw = xh_ref[k] + jnp.dot(carry.astype(mm_dtype), u_ref[...],
                                  preferred_element_type=jnp.float32)
        raw_ref[k] = raw

        disp = raw - state
        # SigJoin / Chen product (level 2), a2/s22 handled analytically outside.
        new_carry = jnp.concatenate(
            [a1 + disp,
             s11 + a1 * disp + 0.5 * disp * disp,
             s12 + a1 * tau + 0.5 * disp * tau,
             s21 + a2_prev * disp + 0.5 * tau * disp,
             raw], axis=1)
        return new_carry, a2_prev + tau

    carry_out, _ = lax.fori_loop(0, t_chunk, body,
                                 (carry_ref[...], a2_start), unroll=True)
    carry_ref[...] = carry_out


def recurrent_sig_sequence(params, xs, states, *,
                           matmul_dtype=jnp.bfloat16,
                           max_chunk=16,
                           num_batch_blocks=1):
    """Run RecurrentSig (output_signatures=False, use_signatures=True) over a
    whole sequence with one fused Pallas kernel.

    xs     : (SEQ, B, input_size)
    states : (prev_sigs (B, n*SIGSIZE) torch unit-major layout, prev_states (B, n))
    Returns (raw_seq (SEQ, B, n), (sigs_final, raw_final)) in the torch layout.
    """
    prev_sigs, prev_states = states
    seq_len, batch, _ = xs.shape
    n = prev_states.shape[1]
    hp = jax.lax.Precision.HIGHEST

    # ---- static tiling choices (lane-dense padding, chunked sequence) -------
    n_pad = _round_up(n, 128)
    b_pad = _round_up(batch, 8 * num_batch_blocks)
    b_blk = b_pad // num_batch_blocks
    t_chunk = _largest_divisor_leq(seq_len, max_chunk)
    n_chunks = seq_len // t_chunk
    width = KEPT * n_pad

    tau = jnp.exp(params["log_timelapse"]).astype(jnp.float32).reshape(1, 1)
    tau_s = tau[0, 0]

    # ---- split U into per-component blocks (rows of U are unit-major) -------
    u = params["U"]
    u_sig = u[: n * SIGSIZE].reshape(n, SIGSIZE, n)     # (unit, component, out)
    u_state = u[n * SIGSIZE:]                           # (n, n)
    u_a1, u_a2, u_s11, u_s12, u_s21, u_s22 = [u_sig[:, c, :] for c in range(SIGSIZE)]

    # ---- hoisted precompute: input projection + data-independent a2/s22 -----
    ps = prev_sigs.reshape(batch, n, SIGSIZE)
    a1_0, a2_0 = ps[..., 0], ps[..., 1]
    s11_0, s12_0, s21_0, s22_0 = ps[..., 2], ps[..., 3], ps[..., 4], ps[..., 5]

    h_all = (jnp.einsum("sbd,dn->sbn", xs, params["W"], precision=hp)
             + params["Wb"] + params["Ub"])                           # (SEQ, B, n)
    # a2_prev(s) = a2_0 + s*tau ;  s22_prev(s) = s22_0 + s*tau*a2_0 + 0.5*(s*tau)^2
    c0 = (jnp.dot(a2_0, u_a2, precision=hp)
          + jnp.dot(s22_0, u_s22, precision=hp))                      # (B, n)
    c1 = jnp.sum(u_a2, axis=0)[None, :] + jnp.dot(a2_0, u_s22, precision=hp)
    c2 = jnp.sum(u_s22, axis=0)[None, :]                              # (1, n)
    svec = jnp.arange(seq_len, dtype=jnp.float32) * tau_s             # (SEQ,)
    xh = (h_all + c0[None]
          + svec[:, None, None] * c1[None]
          + 0.5 * (svec ** 2)[:, None, None] * c2[None])              # (SEQ, B, n)

    # ---- padded, component-major kernel operands ----------------------------
    def pad2(a):   # (B, n) -> (b_pad, n_pad), zeros stay zero through the recurrence
        return jnp.pad(a, ((0, b_pad - batch), (0, n_pad - n)))

    def pad_u(m):  # (n, n) -> (n_pad, n_pad)
        return jnp.pad(m, ((0, n_pad - n), (0, n_pad - n)))

    carry0 = jnp.concatenate(
        [pad2(a1_0), pad2(s11_0), pad2(s12_0), pad2(s21_0), pad2(prev_states)],
        axis=1)                                                       # (b_pad, 5*n_pad)
    a20_p = pad2(a2_0)
    u_all = jnp.concatenate(
        [pad_u(u_a1), pad_u(u_s11), pad_u(u_s12), pad_u(u_s21), pad_u(u_state)],
        axis=0).astype(matmul_dtype)                                  # (5*n_pad, n_pad)
    xh_p = jnp.pad(xh.astype(jnp.float32),
                   ((0, 0), (0, b_pad - batch), (0, n_pad - n)))      # (SEQ, b_pad, n_pad)

    kernel = functools.partial(_recurrent_sig_chunk_kernel,
                               n_pad=n_pad, t_chunk=t_chunk, mm_dtype=matmul_dtype)

    raw_seq_p, carry_out = pl.pallas_call(
        kernel,
        grid=(num_batch_blocks, n_chunks),
        in_specs=[
            pl.BlockSpec((t_chunk, b_blk, n_pad), lambda b, c: (c, b, 0)),  # xh streamed
            pl.BlockSpec((width, n_pad), lambda b, c: (0, 0)),              # U resident
            pl.BlockSpec((b_blk, n_pad), lambda b, c: (b, 0)),              # a2_0 resident
            pl.BlockSpec(memory_space=pltpu.MemorySpace.SMEM),              # tau scalar
            pl.BlockSpec((b_blk, width), lambda b, c: (b, 0)),              # initial carry
        ],
        out_specs=(
            pl.BlockSpec((t_chunk, b_blk, n_pad), lambda b, c: (c, b, 0)),  # raw per chunk
            pl.BlockSpec((b_blk, width), lambda b, c: (b, 0)),              # carried state
        ),
        out_shape=(
            jax.ShapeDtypeStruct((seq_len, b_pad, n_pad), jnp.float32),
            jax.ShapeDtypeStruct((b_pad, width), jnp.float32),
        ),
        compiler_params=pltpu.CompilerParams(
            dimension_semantics=("parallel", "arbitrary")),
    )(xh_p, u_all, a20_p, tau, carry0)

    # ---- unpad and reassemble the torch-layout outputs ----------------------
    raw_seq = raw_seq_p[:, :batch, :n]
    a1_f = carry_out[:batch, 0 * n_pad:0 * n_pad + n]
    s11_f = carry_out[:batch, 1 * n_pad:1 * n_pad + n]
    s12_f = carry_out[:batch, 2 * n_pad:2 * n_pad + n]
    s21_f = carry_out[:batch, 3 * n_pad:3 * n_pad + n]
    raw_final = carry_out[:batch, 4 * n_pad:4 * n_pad + n]
    # Closed forms for the two data-independent terms dropped from the carry.
    t_tau = seq_len * tau_s
    a2_f = a2_0 + t_tau
    s22_f = s22_0 + t_tau * a2_0 + 0.5 * t_tau * t_tau
    sigs_final = jnp.stack([a1_f, a2_f, s11_f, s12_f, s21_f, s22_f],
                           axis=-1).reshape(batch, n * SIGSIZE)
    output_seq = raw_seq   # output_signatures=False (module default)
    return output_seq, (sigs_final, raw_final)


def init_params(key, input_size, n_units, initial_time_lapse=0.1):
    """Parameters with the same layout/semantics as the torch module
    (W stored transposed as (in, out) so the forward uses x @ W)."""
    saved_data_length = n_units * (1 + SIGSIZE)   # use_signatures=True
    k1, k2, k3, k4 = jax.random.split(key, 4)
    bw = 1.0 / math.sqrt(input_size)
    bu = 1.0 / math.sqrt(saved_data_length)
    return dict(
        W=jax.random.uniform(k1, (input_size, n_units), jnp.float32, -bw, bw),
        Wb=jax.random.uniform(k2, (1, n_units), jnp.float32, -bw, bw),
        U=jax.random.uniform(k3, (saved_data_length, n_units), jnp.float32, -bu, bu),
        Ub=jax.random.uniform(k4, (1, n_units), jnp.float32, -bu, bu),
        log_timelapse=jnp.full((1, 1), math.log(initial_time_lapse), jnp.float32),
    )


def init_hidden(batch_size, n_units):
    return (jnp.zeros((batch_size, n_units * SIGSIZE), jnp.float32),
            jnp.zeros((batch_size, n_units), jnp.float32))


def _reference_step(params, x, states):
    """Pure-JAX transcription of the torch module's forward (unit-major layout)."""
    prev_sigs, prev_states = states
    B, n = prev_states.shape
    hp = jax.lax.Precision.HIGHEST
    h = jnp.dot(x, params["W"], precision=hp) + params["Wb"]
    mem = jnp.concatenate([prev_sigs, prev_states], axis=1)
    raw = h + jnp.dot(mem, params["U"], precision=hp) + params["Ub"]
    disp = raw - prev_states
    tau = jnp.exp(params["log_timelapse"])[0, 0]
    ps = prev_sigs.reshape(B, n, SIGSIZE)
    a1, a2 = ps[..., 0], ps[..., 1]
    s11, s12, s21, s22 = ps[..., 2], ps[..., 3], ps[..., 4], ps[..., 5]
    new = jnp.stack([a1 + disp,
                     a2 + tau,
                     s11 + a1 * disp + 0.5 * disp * disp,
                     s12 + a1 * tau + 0.5 * disp * tau,
                     s21 + a2 * disp + 0.5 * tau * disp,
                     s22 + a2 * tau + 0.5 * tau * tau], axis=-1)
    return raw, (new.reshape(B, n * SIGSIZE), raw)


if __name__ == "__main__":
    SEQ, B, INPUT_SIZE, N_UNITS = 8, 2, 4, 32

    key = jax.random.PRNGKey(0)
    kp, kx, ks1, ks2 = jax.random.split(key, 4)
    params = init_params(kp, INPUT_SIZE, N_UNITS)
    xs = jax.random.normal(kx, (SEQ, B, INPUT_SIZE), jnp.float32)
    states_zero = init_hidden(B, N_UNITS)
    # Non-zero initial state to exercise the a2/s22 algebraic hoist.
    states_rand = (0.1 * jax.random.normal(ks1, (B, N_UNITS * SIGSIZE), jnp.float32),
                   0.1 * jax.random.normal(ks2, (B, N_UNITS), jnp.float32))

    run_bf16 = jax.jit(functools.partial(recurrent_sig_sequence,
                                         matmul_dtype=jnp.bfloat16))
    run_f32 = jax.jit(functools.partial(recurrent_sig_sequence,
                                        matmul_dtype=jnp.float32))

    def reference_rollout(states):
        st = states
        raws = []
        for t in range(SEQ):
            r, st = _reference_step(params, xs[t], st)
            raws.append(r)
        return jnp.stack(raws, axis=0), st

    def check(out, states, rtol, atol):
        raw_seq, (sigs_final, raw_final) = out
        ref_raw_seq, (ref_sigs, ref_raw_final) = reference_rollout(states)
        assert raw_seq.shape == (SEQ, B, N_UNITS)
        assert sigs_final.shape == (B, N_UNITS * SIGSIZE)
        assert raw_final.shape == (B, N_UNITS)
        assert jnp.allclose(raw_seq, ref_raw_seq, rtol=rtol, atol=atol), "raw seq mismatch"
        assert jnp.allclose(sigs_final, ref_sigs, rtol=rtol, atol=atol), "final sig mismatch"
        assert jnp.allclose(raw_final, ref_raw_final, rtol=rtol, atol=atol), "final state mismatch"

    out_f32_zero = run_f32(params, xs, states_zero)
    out_f32_rand = run_f32(params, xs, states_rand)
    out_bf16_zero = run_bf16(params, xs, states_zero)
    jax.block_until_ready((out_f32_zero, out_f32_rand, out_bf16_zero))

    # f32 MXU path: tight correctness check against the step-by-step reference.
    check(out_f32_zero, states_zero, 1e-3, 1e-3)
    check(out_f32_rand, states_rand, 1e-3, 1e-3)
    # bf16-operand path (perf default): rounding compounds through the recurrent
    # state, so only a coarse sanity check against the f32 reference.
    check(out_bf16_zero, states_zero, 1e-1, 1e-1)

    print("KERNEL_OK")
</pallas_src>

<mosaic_0001>
module attributes {stable_mosaic.version = 11 : i64} {
  func.func @_recurrent_sig_chunk_kernel(%arg0: i32, %arg1: i32, %arg2: memref<8x8x128xf32, #tpu.memory_space<vmem>>, %arg3: memref<640x128xf32, #tpu.memory_space<vmem>>, %arg4: memref<8x128xf32, #tpu.memory_space<vmem>>, %arg5: memref<1x1xf32, #tpu.memory_space<smem>>, %arg6: memref<8x640xf32, #tpu.memory_space<vmem>>, %arg7: memref<8x8x128xf32, #tpu.memory_space<vmem>>, %arg8: memref<8x640xf32, #tpu.memory_space<vmem>>) attributes {dimension_semantics = [#tpu.dimension_semantics<parallel>, #tpu.dimension_semantics<arbitrary>], iteration_bounds = array<i64: 1, 1>, scalar_prefetch = 0 : i64, scratch_operands = 0 : i64, tpu.core_type = #tpu.core_type<tc>, window_params = [{transform_indices = @transform_0, window_bounds = array<i64: 8, 8, 128>}, {pipeline_mode = #tpu.pipeline_mode<synchronous>, transform_indices = @transform_1, window_bounds = array<i64: 640, 128>}, {transform_indices = @transform_2, window_bounds = array<i64: 8, 128>}, {transform_indices = @transform_3, window_bounds = array<i64: 1, 1>}, {transform_indices = @transform_4, window_bounds = array<i64: 8, 640>}, {transform_indices = @transform_5, window_bounds = array<i64: 8, 8, 128>}, {transform_indices = @transform_6, window_bounds = array<i64: 8, 640>}]} {
    %c0_i32 = arith.constant 0 : i32
    %0 = arith.cmpi eq, %arg1, %c0_i32 : i32
    %1 = arith.extui %0 : i1 to i32
    %c0_i32_0 = arith.constant 0 : i32
    %2 = arith.cmpi ne, %1, %c0_i32_0 : i32
    scf.if %2 {
      %c0_89 = arith.constant 0 : index
      %c0_90 = arith.constant 0 : index
      %332 = vector.load %arg6[%c0_89, %c0_90] : memref<8x640xf32, #tpu.memory_space<vmem>>, vector<8x640xf32>
      %c0_91 = arith.constant 0 : index
      %c0_92 = arith.constant 0 : index
      %333 = vector.load %arg8[%c0_91, %c0_92] : memref<8x640xf32, #tpu.memory_space<vmem>>, vector<8x640xf32>
      tpu.vector_store %arg8[%c0_91, %c0_92], %332 {strides = array<i32>} : memref<8x640xf32, #tpu.memory_space<vmem>>, vector<8x640xf32>,
    } else {
    }
    %c0 = arith.constant 0 : index
    %c0_1 = arith.constant 0 : index
    %3 = memref.load %arg5[%c0, %c0_1] : memref<1x1xf32, #tpu.memory_space<smem>>
    %c8_i32 = arith.constant 8 : i32
    %4 = arith.muli %arg1, %c8_i32 : i32
    %5 = arith.sitofp %4 : i32 to f32
    %c0_2 = arith.constant 0 : index
    %c0_3 = arith.constant 0 : index
    %6 = vector.load %arg4[%c0_2, %c0_3] : memref<8x128xf32, #tpu.memory_space<vmem>>, vector<8x128xf32>
    %7 = arith.mulf %5, %3 : f32
    %8 = vector.broadcast %7 : f32 to vector<8x128xf32>
    %9 = arith.addf %6, %8 : vector<8x128xf32>
    %c0_4 = arith.constant 0 : index
    %c0_5 = arith.constant 0 : index
    %10 = vector.load %arg8[%c0_4, %c0_5] : memref<8x640xf32, #tpu.memory_space<vmem>>, vector<8x640xf32>
    %c0_i32_6 = arith.constant 0 : i32
    %11 = vector.extract_strided_slice %10 {offsets = [0, 0], sizes = [8, 128], strides = [1, 1]} : vector<8x640xf32> to vector<8x128xf32>
    %12 = vector.extract_strided_slice %10 {offsets = [0, 128], sizes = [8, 128], strides = [1, 1]} : vector<8x640xf32> to vector<8x128xf32>
    %13 = vector.extract_strided_slice %10 {offsets = [0, 256], sizes = [8, 128], strides = [1, 1]} : vector<8x640xf32> to vector<8x128xf32>
    %14 = vector.extract_strided_slice %10 {offsets = [0, 384], sizes = [8, 128], strides = [1, 1]} : vector<8x640xf32> to vector<8x128xf32>
    %15 = vector.extract_strided_slice %10 {offsets = [0, 512], sizes = [8, 128], strides = [1, 1]} : vector<8x640xf32> to vector<8x128xf32>
    %16 = arith.index_cast %c0_i32_6 : i32 to index
    %c0_7 = arith.constant 0 : index
    %c0_8 = arith.constant 0 : index
    %17 = vector.load %arg2[%16, %c0_7, %c0_8] : memref<8x8x128xf32, #tpu.memory_space<vmem>>, vector<1x8x128xf32>
    %18 = vector.shape_cast %17 : vector<1x8x128xf32> to vector<8x128xf32>
    %c0_9 = arith.constant 0 : index
    %c0_10 = arith.constant 0 : index
    %19 = vector.load %arg3[%c0_9, %c0_10] : memref<640x128xf32, #tpu.memory_space<vmem>>, vector<640x128xf32>
    %cst = arith.constant dense<0.000000e+00> : vector<8x128xf32>
    %20 = tpu.matmul %10, %19, %cst {dimension_numbers = #tpu.dot_dimension_numbers<[1], [0], [0], [1], [0, 0, 1, 1], [], []>} : vector<8x640xf32>, vector<640x128xf32>, vector<8x128xf32> -> vector<8x128xf32>
    %21 = arith.addf %18, %20 : vector<8x128xf32>
    %22 = arith.index_cast %c0_i32_6 : i32 to index
    %c0_11 = arith.constant 0 : index
    %c0_12 = arith.constant 0 : index
    %23 = vector.load %arg7[%22, %c0_11, %c0_12] : memref<8x8x128xf32, #tpu.memory_space<vmem>>, vector<1x8x128xf32>
    %24 = vector.shape_cast %23 : vector<1x8x128xf32> to vector<8x128xf32>
    %25 = vector.shape_cast %21 : vector<8x128xf32> to vector<1x8x128xf32>
    tpu.vector_store %arg7[%22, %c0_11, %c0_12], %25 {strides = array<i32>} : memref<8x8x128xf32, #tpu.memory_space<vmem>>, vector<1x8x128xf32>,
    %26 = arith.subf %21, %15 : vector<8x128xf32>
    %27 = arith.addf %11, %26 : vector<8x128xf32>
    %28 = arith.mulf %11, %26 : vector<8x128xf32>
    %29 = arith.addf %12, %28 : vector<8x128xf32>
    %cst_13 = arith.constant 5.000000e-01 : f32
    %30 = vector.broadcast %cst_13 : f32 to vector<8x128xf32>
    %31 = arith.mulf %30, %26 : vector<8x128xf32>
    %32 = arith.mulf %31, %26 : vector<8x128xf32>
    %33 = arith.addf %29, %32 : vector<8x128xf32>
    %34 = vector.broadcast %3 : f32 to vector<8x128xf32>
    %35 = arith.mulf %11, %34 : vector<8x128xf32>
    %36 = arith.addf %13, %35 : vector<8x128xf32>
    %cst_14 = arith.constant 5.000000e-01 : f32
    %37 = vector.broadcast %cst_14 : f32 to vector<8x128xf32>
    %38 = arith.mulf %37, %26 : vector<8x128xf32>
    %39 = vector.broadcast %3 : f32 to vector<8x128xf32>
    %40 = arith.mulf %38, %39 : vector<8x128xf32>
    %41 = arith.addf %36, %40 : vector<8x128xf32>
    %42 = arith.mulf %9, %26 : vector<8x128xf32>
    %43 = arith.addf %14, %42 : vector<8x128xf32>
    %cst_15 = arith.constant 5.000000e-01 : f32
    %44 = arith.mulf %cst_15, %3 : f32
    %45 = vector.broadcast %44 : f32 to vector<8x128xf32>
    %46 = arith.mulf %45, %26 : vector<8x128xf32>
    %47 = arith.addf %43, %46 : vector<8x128xf32>
    %48 = tpu.concatenate %27, %33, %41, %47, %21 in 1 : vector<8x128xf32>, vector<8x128xf32>, vector<8x128xf32>, vector<8x128xf32>, vector<8x128xf32> -> vector<8x640xf32>
    %49 = vector.broadcast %3 : f32 to vector<8x128xf32>
    %50 = arith.addf %9, %49 : vector<8x128xf32>
    %c1_i32 = arith.constant 1 : i32
    %51 = vector.extract_strided_slice %48 {offsets = [0, 0], sizes = [8, 128], strides = [1, 1]} : vector<8x640xf32> to vector<8x128xf32>
    %52 = vector.extract_strided_slice %48 {offsets = [0, 128], sizes = [8, 128], strides = [1, 1]} : vector<8x640xf32> to vector<8x128xf32>
    %53 = vector.extract_strided_slice %48 {offsets = [0, 256], sizes = [8, 128], strides = [1, 1]} : vector<8x640xf32> to vector<8x128xf32>
    %54 = vector.extract_strided_slice %48 {offsets = [0, 384], sizes = [8, 128], strides = [1, 1]} : vector<8x640xf32> to vector<8x128xf32>
    %55 = vector.extract_strided_slice %48 {offsets = [0, 512], sizes = [8, 128], strides = [1, 1]} : vector<8x640xf32> to vector<8x128xf32>
    %56 = arith.index_cast %c1_i32 : i32 to index
    %c0_16 = arith.constant 0 : index
    %c0_17 = arith.constant 0 : index
    %57 = vector.load %arg2[%56, %c0_16, %c0_17] : memref<8x8x128xf32, #tpu.memory_space<vmem>>, vector<1x8x128xf32>
    %58 = vector.shape_cast %57 : vector<1x8x128xf32> to vector<8x128xf32>
    %c0_18 = arith.constant 0 : index
    %c0_19 = arith.constant 0 : index
    %59 = vector.load %arg3[%c0_18, %c0_19] : memref<640x128xf32, #tpu.memory_space<vmem>>, vector<640x128xf32>
    %cst_20 = arith.constant dense<0.000000e+00> : vector<8x128xf32>
    %60 = tpu.matmul %48, %59, %cst_20 {dimension_numbers = #tpu.dot_dimension_numbers<[1], [0], [0], [1], [0, 0, 1, 1], [], []>} : vector<8x640xf32>, vector<640x128xf32>, vector<8x128xf32> -> vector<8x128xf32>
    %61 = arith.addf %58, %60 : vector<8x128xf32>
    %62 = arith.index_cast %c1_i32 : i32 to index
    %c0_21 = arith.constant 0 : index
    %c0_22 = arith.constant 0 : index
    %63 = vector.load %arg7[%62, %c0_21, %c0_22] : memref<8x8x128xf32, #tpu.memory_space<vmem>>, vector<1x8x128xf32>
    %64 = vector.shape_cast %63 : vector<1x8x128xf32> to vector<8x128xf32>
    %65 = vector.shape_cast %61 : vector<8x128xf32> to vector<1x8x128xf32>
    tpu.vector_store %arg7[%62, %c0_21, %c0_22], %65 {strides = array<i32>} : memref<8x8x128xf32, #tpu.memory_space<vmem>>, vector<1x8x128xf32>,
    %66 = arith.subf %61, %55 : vector<8x128xf32>
    %67 = arith.addf %51, %66 : vector<8x128xf32>
    %68 = arith.mulf %51, %66 : vector<8x128xf32>
    %69 = arith.addf %52, %68 : vector<8x128xf32>
    %cst_23 = arith.constant 5.000000e-01 : f32
    %70 = vector.broadcast %cst_23 : f32 to vector<8x128xf32>
    %71 = arith.mulf %70, %66 : vector<8x128xf32>
    %72 = arith.mulf %71, %66 : vector<8x128xf32>
    %73 = arith.addf %69, %72 : vector<8x128xf32>
    %74 = vector.broadcast %3 : f32 to vector<8x128xf32>
    %75 = arith.mulf %51, %74 : vector<8x128xf32>
    %76 = arith.addf %53, %75 : vector<8x128xf32>
    %cst_24 = arith.constant 5.000000e-01 : f32
    %77 = vector.broadcast %cst_24 : f32 to vector<8x128xf32>
    %78 = arith.mulf %77, %66 : vector<8x128xf32>
    %79 = vector.broadcast %3 : f32 to vector<8x128xf32>
    %80 = arith.mulf %78, %79 : vector<8x128xf32>
    %81 = arith.addf %76, %80 : vector<8x128xf32>
    %82 = arith.mulf %50, %66 : vector<8x128xf32>
    %83 = arith.addf %54, %82 : vector<8x128xf32>
    %cst_25 = arith.constant 5.000000e-01 : f32
    %84 = arith.mulf %cst_25, %3 : f32
    %85 = vector.broadcast %84 : f32 to vector<8x128xf32>
    %86 = arith.mulf %85, %66 : vector<8x128xf32>
    %87 = arith.addf %83, %86 : vector<8x128xf32>
    %88 = tpu.concatenate %67, %73, %81, %87, %61 in 1 : vector<8x128xf32>, vector<8x128xf32>, vector<8x128xf32>, vector<8x128xf32>, vector<8x128xf32> -> vector<8x640xf32>
    %89 = vector.broadcast %3 : f32 to vector<8x128xf32>
    %90 = arith.addf %50, %89 : vector<8x128xf32>
    %c2_i32 = arith.constant 2 : i32
    %91 = vector.extract_strided_slice %88 {offsets = [0, 0], sizes = [8, 128], strides = [1, 1]} : vector<8x640xf32> to vector<8x128xf32>
    %92 = vector.extract_strided_slice %88 {offsets = [0, 128], sizes = [8, 128], strides = [1, 1]} : vector<8x640xf32> to vector<8x128xf32>
    %93 = vector.extract_strided_slice %88 {offsets = [0, 256], sizes = [8, 128], strides = [1, 1]} : vector<8x640xf32> to vector<8x128xf32>
    %94 = vector.extract_strided_slice %88 {offsets = [0, 384], sizes = [8, 128], strides = [1, 1]} : vector<8x640xf32> to vector<8x128xf32>
    %95 = vector.extract_strided_slice %88 {offsets = [0, 512], sizes = [8, 128], strides = [1, 1]} : vector<8x640xf32> to vector<8x128xf32>
    %96 = arith.index_cast %c2_i32 : i32 to index
    %c0_26 = arith.constant 0 : index
    %c0_27 = arith.constant 0 : index
    %97 = vector.load %arg2[%96, %c0_26, %c0_27] : memref<8x8x128xf32, #tpu.memory_space<vmem>>, vector<1x8x128xf32>
    %98 = vector.shape_cast %97 : vector<1x8x128xf32> to vector<8x128xf32>
    %c0_28 = arith.constant 0 : index
    %c0_29 = arith.constant 0 : index
    %99 = vector.load %arg3[%c0_28, %c0_29] : memref<640x128xf32, #tpu.memory_space<vmem>>, vector<640x128xf32>
    %cst_30 = arith.constant dense<0.000000e+00> : vector<8x128xf32>
    %100 = tpu.matmul %88, %99, %cst_30 {dimension_numbers = #tpu.dot_dimension_numbers<[1], [0], [0], [1], [0, 0, 1, 1], [], []>} : vector<8x640xf32>, vector<640x128xf32>, vector<8x128xf32> -> vector<8x128xf32>
    %101 = arith.addf %98, %100 : vector<8x128xf32>
    %102 = arith.index_cast %c2_i32 : i32 to index
    %c0_31 = arith.constant 0 : index
    %c0_32 = arith.constant 0 : index
    %103 = vector.load %arg7[%102, %c0_31, %c0_32] : memref<8x8x128xf32, #tpu.memory_space<vmem>>, vector<1x8x128xf32>
    %104 = vector.shape_cast %103 : vector<1x8x128xf32> to vector<8x128xf32>
    %105 = vector.shape_cast %101 : vector<8x128xf32> to vector<1x8x128xf32>
    tpu.vector_store %arg7[%102, %c0_31, %c0_32], %105 {strides = array<i32>} : memref<8x8x128xf32, #tpu.memory_space<vmem>>, vector<1x8x128xf32>,
    %106 = arith.subf %101, %95 : vector<8x128xf32>
    %107 = arith.addf %91, %106 : vector<8x128xf32>
    %108 = arith.mulf %91, %106 : vector<8x128xf32>
    %109 = arith.addf %92, %108 : vector<8x128xf32>
    %cst_33 = arith.constant 5.000000e-01 : f32
    %110 = vector.broadcast %cst_33 : f32 to vector<8x128xf32>
    %111 = arith.mulf %110, %106 : vector<8x128xf32>
    %112 = arith.mulf %111, %106 : vector<8x128xf32>
    %113 = arith.addf %109, %112 : vector<8x128xf32>
    %114 = vector.broadcast %3 : f32 to vector<8x128xf32>
    %115 = arith.mulf %91, %114 : vector<8x128xf32>
    %116 = arith.addf %93, %115 : vector<8x128xf32>
    %cst_34 = arith.constant 5.000000e-01 : f32
    %117 = vector.broadcast %cst_34 : f32 to vector<8x128xf32>
    %118 = arith.mulf %117, %106 : vector<8x128xf32>
    %119 = vector.broadcast %3 : f32 to vector<8x128xf32>
    %120 = arith.mulf %118, %119 : vector<8x128xf32>
    %121 = arith.addf %116, %120 : vector<8x128xf32>
    %122 = arith.mulf %90, %106 : vector<8x128xf32>
    %123 = arith.addf %94, %122 : vector<8x128xf32>
    %cst_35 = arith.constant 5.000000e-01 : f32
    %124 = arith.mulf %cst_35, %3 : f32
    %125 = vector.broadcast %124 : f32 to vector<8x128xf32>
    %126 = arith.mulf %125, %106 : vector<8x128xf32>
    %127 = arith.addf %123, %126 : vector<8x128xf32>
    %128 = tpu.concatenate %107, %113, %121, %127, %101 in 1 : vector<8x128xf32>, vector<8x128xf32>, vector<8x128xf32>, vector<8x128xf32>, vector<8x128xf32> -> vector<8x640xf32>
    %129 = vector.broadcast %3 : f32 to vector<8x128xf32>
    %130 = arith.addf %90, %129 : vector<8x128xf32>
    %c3_i32 = arith.constant 3 : i32
    %131 = vector.extract_strided_slice %128 {offsets = [0, 0], sizes = [8, 128], strides = [1, 1]} : vector<8x640xf32> to vector<8x128xf32>
    %132 = vector.extract_strided_slice %128 {offsets = [0, 128], sizes = [8, 128], strides = [1, 1]} : vector<8x640xf32> to vector<8x128xf32>
    %133 = vector.extract_strided_slice %128 {offsets = [0, 256], sizes = [8, 128], strides = [1, 1]} : vector<8x640xf32> to vector<8x128xf32>
    %134 = vector.extract_strided_slice %128 {offsets = [0, 384], sizes = [8, 128], strides = [1, 1]} : vector<8x640xf32> to vector<8x128xf32>
    %135 = vector.extract_strided_slice %128 {offsets = [0, 512], sizes = [8, 128], strides = [1, 1]} : vector<8x640xf32> to vector<8x128xf32>
    %136 = arith.index_cast %c3_i32 : i32 to index
    %c0_36 = arith.constant 0 : index
    %c0_37 = arith.constant 0 : index
    %137 = vector.load %arg2[%136, %c0_36, %c0_37] : memref<8x8x128xf32, #tpu.memory_space<vmem>>, vector<1x8x128xf32>
    %138 = vector.shape_cast %137 : vector<1x8x128xf32> to vector<8x128xf32>
    %c0_38 = arith.constant 0 : index
    %c0_39 = arith.constant 0 : index
    %139 = vector.load %arg3[%c0_38, %c0_39] : memref<640x128xf32, #tpu.memory_space<vmem>>, vector<640x128xf32>
    %cst_40 = arith.constant dense<0.000000e+00> : vector<8x128xf32>
    %140 = tpu.matmul %128, %139, %cst_40 {dimension_numbers = #tpu.dot_dimension_numbers<[1], [0], [0], [1], [0, 0, 1, 1], [], []>} : vector<8x640xf32>, vector<640x128xf32>, vector<8x128xf32> -> vector<8x128xf32>
    %141 = arith.addf %138, %140 : vector<8x128xf32>
    %142 = arith.index_cast %c3_i32 : i32 to index
    %c0_41 = arith.constant 0 : index
    %c0_42 = arith.constant 0 : index
    %143 = vector.load %arg7[%142, %c0_41, %c0_42] : memref<8x8x128xf32, #tpu.memory_space<vmem>>, vector<1x8x128xf32>
    %144 = vector.shape_cast %143 : vector<1x8x128xf32> to vector<8x128xf32>
    %145 = vector.shape_cast %141 : vector<8x128xf32> to vector<1x8x128xf32>
    tpu.vector_store %arg7[%142, %c0_41, %c0_42], %145 {strides = array<i32>} : memref<8x8x128xf32, #tpu.memory_space<vmem>>, vector<1x8x128xf32>,
    %146 = arith.subf %141, %135 : vector<8x128xf32>
    %147 = arith.addf %131, %146 : vector<8x128xf32>
    %148 = arith.mulf %131, %146 : vector<8x128xf32>
    %149 = arith.addf %132, %148 : vector<8x128xf32>
    %cst_43 = arith.constant 5.000000e-01 : f32
    %150 = vector.broadcast %cst_43 : f32 to vector<8x128xf32>
    %151 = arith.mulf %150, %146 : vector<8x128xf32>
    %152 = arith.mulf %151, %146 : vector<8x128xf32>
    %153 = arith.addf %149, %152 : vector<8x128xf32>
    %154 = vector.broadcast %3 : f32 to vector<8x128xf32>
    %155 = arith.mulf %131, %154 : vector<8x128xf32>
    %156 = arith.addf %133, %155 : vector<8x128xf32>
    %cst_44 = arith.constant 5.000000e-01 : f32
    %157 = vector.broadcast %cst_44 : f32 to vector<8x128xf32>
    %158 = arith.mulf %157, %146 : vector<8x128xf32>
    %159 = vector.broadcast %3 : f32 to vector<8x128xf32>
    %160 = arith.mulf %158, %159 : vector<8x128xf32>
    %161 = arith.addf %156, %160 : vector<8x128xf32>
    %162 = arith.mulf %130, %146 : vector<8x128xf32>
    %163 = arith.addf %134, %162 : vector<8x128xf32>
    %cst_45 = arith.constant 5.000000e-01 : f32
    %164 = arith.mulf %cst_45, %3 : f32
    %165 = vector.broadcast %164 : f32 to vector<8x128xf32>
    %166 = arith.mulf %165, %146 : vector<8x128xf32>
    %167 = arith.addf %163, %166 : vector<8x128xf32>
    %168 = tpu.concatenate %147, %153, %161, %167, %141 in 1 : vector<8x128xf32>, vector<8x128xf32>, vector<8x128xf32>, vector<8x128xf32>, vector<8x128xf32> -> vector<8x640xf32>
    %169 = vector.broadcast %3 : f32 to vector<8x128xf32>
    %170 = arith.addf %130, %169 : vector<8x128xf32>
    %c4_i32 = arith.constant 4 : i32
    %171 = vector.extract_strided_slice %168 {offsets = [0, 0], sizes = [8, 128], strides = [1, 1]} : vector<8x640xf32> to vector<8x128xf32>
    %172 = vector.extract_strided_slice %168 {offsets = [0, 128], sizes = [8, 128], strides = [1, 1]} : vector<8x640xf32> to vector<8x128xf32>
    %173 = vector.extract_strided_slice %168 {offsets = [0, 256], sizes = [8, 128], strides = [1, 1]} : vector<8x640xf32> to vector<8x128xf32>
    %174 = vector.extract_strided_slice %168 {offsets = [0, 384], sizes = [8, 128], strides = [1, 1]} : vector<8x640xf32> to vector<8x128xf32>
    %175 = vector.extract_strided_slice %168 {offsets = [0, 512], sizes = [8, 128], strides = [1, 1]} : vector<8x640xf32> to vector<8x128xf32>
    %176 = arith.index_cast %c4_i32 : i32 to index
    %c0_46 = arith.constant 0 : index
    %c0_47 = arith.constant 0 : index
    %177 = vector.load %arg2[%176, %c0_46, %c0_47] : memref<8x8x128xf32, #tpu.memory_space<vmem>>, vector<1x8x128xf32>
    %178 = vector.shape_cast %177 : vector<1x8x128xf32> to vector<8x128xf32>
    %c0_48 = arith.constant 0 : index
    %c0_49 = arith.constant 0 : index
    %179 = vector.load %arg3[%c0_48, %c0_49] : memref<640x128xf32, #tpu.memory_space<vmem>>, vector<640x128xf32>
    %cst_50 = arith.constant dense<0.000000e+00> : vector<8x128xf32>
    %180 = tpu.matmul %168, %179, %cst_50 {dimension_numbers = #tpu.dot_dimension_numbers<[1], [0], [0], [1], [0, 0, 1, 1], [], []>} : vector<8x640xf32>, vector<640x128xf32>, vector<8x128xf32> -> vector<8x128xf32>
    %181 = arith.addf %178, %180 : vector<8x128xf32>
    %182 = arith.index_cast %c4_i32 : i32 to index
    %c0_51 = arith.constant 0 : index
    %c0_52 = arith.constant 0 : index
    %183 = vector.load %arg7[%182, %c0_51, %c0_52] : memref<8x8x128xf32, #tpu.memory_space<vmem>>, vector<1x8x128xf32>
    %184 = vector.shape_cast %183 : vector<1x8x128xf32> to vector<8x128xf32>
    %185 = vector.shape_cast %181 : vector<8x128xf32> to vector<1x8x128xf32>
    tpu.vector_store %arg7[%182, %c0_51, %c0_52], %185 {strides = array<i32>} : memref<8x8x128xf32, #tpu.memory_space<vmem>>, vector<1x8x128xf32>,
    %186 = arith.subf %181, %175 : vector<8x128xf32>
    %187 = arith.addf %171, %186 : vector<8x128xf32>
    %188 = arith.mulf %171, %186 : vector<8x128xf32>
    %189 = arith.addf %172, %188 : vector<8x128xf32>
    %cst_53 = arith.constant 5.000000e-01 : f32
    %190 = vector.broadcast %cst_53 : f32 to vector<8x128xf32>
    %191 = arith.mulf %190, %186 : vector<8x128xf32>
    %192 = arith.mulf %191, %186 : vector<8x128xf32>
    %193 = arith.addf %189, %192 : vector<8x128xf32>
    %194 = vector.broadcast %3 : f32 to vector<8x128xf32>
    %195 = arith.mulf %171, %194 : vector<8x128xf32>
    %196 = arith.addf %173, %195 : vector<8x128xf32>
    %cst_54 = arith.constant 5.000000e-01 : f32
    %197 = vector.broadcast %cst_54 : f32 to vector<8x128xf32>
    %198 = arith.mulf %197, %186 : vector<8x128xf32>
    %199 = vector.broadcast %3 : f32 to vector<8x128xf32>
    %200 = arith.mulf %198, %199 : vector<8x128xf32>
    %201 = arith.addf %196, %200 : vector<8x128xf32>
    %202 = arith.mulf %170, %186 : vector<8x128xf32>
    %203 = arith.addf %174, %202 : vector<8x128xf32>
    %cst_55 = arith.constant 5.000000e-01 : f32
    %204 = arith.mulf %cst_55, %3 : f32
    %205 = vector.broadcast %204 : f32 to vector<8x128xf32>
    %206 = arith.mulf %205, %186 : vector<8x128xf32>
    %207 = arith.addf %203, %206 : vector<8x128xf32>
    %208 = tpu.concatenate %187, %193, %201, %207, %181 in 1 : vector<8x128xf32>, vector<8x128xf32>, vector<8x128xf32>, vector<8x128xf32>, vector<8x128xf32> -> vector<8x640xf32>
    %209 = vector.broadcast %3 : f32 to vector<8x128xf32>
    %210 = arith.addf %170, %209 : vector<8x128xf32>
    %c5_i32 = arith.constant 5 : i32
    %211 = vector.extract_strided_slice %208 {offsets = [0, 0], sizes = [8, 128], strides = [1, 1]} : vector<8x640xf32> to vector<8x128xf32>
    %212 = vector.extract_strided_slice %208 {offsets = [0, 128], sizes = [8, 128], strides = [1, 1]} : vector<8x640xf32> to vector<8x128xf32>
    %213 = vector.extract_strided_slice %208 {offsets = [0, 256], sizes = [8, 128], strides = [1, 1]} : vector<8x640xf32> to vector<8x128xf32>
    %214 = vector.extract_strided_slice %208 {offsets = [0, 384], sizes = [8, 128], strides = [1, 1]} : vector<8x640xf32> to vector<8x128xf32>
    %215 = vector.extract_strided_slice %208 {offsets = [0, 512], sizes = [8, 128], strides = [1, 1]} : vector<8x640xf32> to vector<8x128xf32>
    %216 = arith.index_cast %c5_i32 : i32 to index
    %c0_56 = arith.constant 0 : index
    %c0_57 = arith.constant 0 : index
    %217 = vector.load %arg2[%216, %c0_56, %c0_57] : memref<8x8x128xf32, #tpu.memory_space<vmem>>, vector<1x8x128xf32>
    %218 = vector.shape_cast %217 : vector<1x8x128xf32> to vector<8x128xf32>
    %c0_58 = arith.constant 0 : index
    %c0_59 = arith.constant 0 : index
    %219 = vector.load %arg3[%c0_58, %c0_59] : memref<640x128xf32, #tpu.memory_space<vmem>>, vector<640x128xf32>
    %cst_60 = arith.constant dense<0.000000e+00> : vector<8x128xf32>
    %220 = tpu.matmul %208, %219, %cst_60 {dimension_numbers = #tpu.dot_dimension_numbers<[1], [0], [0], [1], [0, 0, 1, 1], [], []>} : vector<8x640xf32>, vector<640x128xf32>, vector<8x128xf32> -> vector<8x128xf32>
    %221 = arith.addf %218, %220 : vector<8x128xf32>
    %222 = arith.index_cast %c5_i32 : i32 to index
    %c0_61 = arith.constant 0 : index
    %c0_62 = arith.constant 0 : index
    %223 = vector.load %arg7[%222, %c0_61, %c0_62] : memref<8x8x128xf32, #tpu.memory_space<vmem>>, vector<1x8x128xf32>
    %224 = vector.shape_cast %223 : vector<1x8x128xf32> to vector<8x128xf32>
    %225 = vector.shape_cast %221 : vector<8x128xf32> to vector<1x8x128xf32>
    tpu.vector_store %arg7[%222, %c0_61, %c0_62], %225 {strides = array<i32>} : memref<8x8x128xf32, #tpu.memory_space<vmem>>, vector<1x8x128xf32>,
    %226 = arith.subf %221, %215 : vector<8x128xf32>
    %227 = arith.addf %211, %226 : vector<8x128xf32>
    %228 = arith.mulf %211, %226 : vector<8x128xf32>
    %229 = arith.addf %212, %228 : vector<8x128xf32>
    %cst_63 = arith.constant 5.000000e-01 : f32
    %230 = vector.broadcast %cst_63 : f32 to vector<8x128xf32>
    %231 = arith.mulf %230, %226 : vector<8x128xf32>
    %232 = arith.mulf %231, %226 : vector<8x128xf32>
    %233 = arith.addf %229, %232 : vector<8x128xf32>
    %234 = vector.broadcast %3 : f32 to vector<8x128xf32>
    %235 = arith.mulf %211, %234 : vector<8x128xf32>
    %236 = arith.addf %213, %235 : vector<8x128xf32>
    %cst_64 = arith.constant 5.000000e-01 : f32
    %237 = vector.broadcast %cst_64 : f32 to vector<8x128xf32>
    %238 = arith.mulf %237, %226 : vector<8x128xf32>
    %239 = vector.broadcast %3 : f32 to vector<8x128xf32>
    %240 = arith.mulf %238, %239 : vector<8x128xf32>
    %241 = arith.addf %236, %240 : vector<8x128xf32>
    %242 = arith.mulf %210, %226 : vector<8x128xf32>
    %243 = arith.addf %214, %242 : vector<8x128xf32>
    %cst_65 = arith.constant 5.000000e-01 : f32
    %244 = arith.mulf %cst_65, %3 : f32
    %245 = vector.broadcast %244 : f32 to vector<8x128xf32>
    %246 = arith.mulf %245, %226 : vector<8x128xf32>
    %247 = arith.addf %243, %246 : vector<8x128xf32>
    %248 = tpu.concatenate %227, %233, %241, %247, %221 in 1 : vector<8x128xf32>, vector<8x128xf32>, vector<8x128xf32>, vector<8x128xf32>, vector<8x128xf32> -> vector<8x640xf32>
    %249 = vector.broadcast %3 : f32 to vector<8x128xf32>
    %250 = arith.addf %210, %249 : vector<8x128xf32>
    %c6_i32 = arith.constant 6 : i32
    %251 = vector.extract_strided_slice %248 {offsets = [0, 0], sizes = [8, 128], strides = [1, 1]} : vector<8x640xf32> to vector<8x128xf32>
    %252 = vector.extract_strided_slice %248 {offsets = [0, 128], sizes = [8, 128], strides = [1, 1]} : vector<8x640xf32> to vector<8x128xf32>
    %253 = vector.extract_strided_slice %248 {offsets = [0, 256], sizes = [8, 128], strides = [1, 1]} : vector<8x640xf32> to vector<8x128xf32>
    %254 = vector.extract_strided_slice %248 {offsets = [0, 384], sizes = [8, 128], strides = [1, 1]} : vector<8x640xf32> to vector<8x128xf32>
    %255 = vector.extract_strided_slice %248 {offsets = [0, 512], sizes = [8, 128], strides = [1, 1]} : vector<8x640xf32> to vector<8x128xf32>
    %256 = arith.index_cast %c6_i32 : i32 to index
    %c0_66 = arith.constant 0 : index
    %c0_67 = arith.constant 0 : index
    %257 = vector.load %arg2[%256, %c0_66, %c0_67] : memref<8x8x128xf32, #tpu.memory_space<vmem>>, vector<1x8x128xf32>
    %258 = vector.shape_cast %257 : vector<1x8x128xf32> to vector<8x128xf32>
    %c0_68 = arith.constant 0 : index
    %c0_69 = arith.constant 0 : index
    %259 = vector.load %arg3[%c0_68, %c0_69] : memref<640x128xf32, #tpu.memory_space<vmem>>, vector<640x128xf32>
    %cst_70 = arith.constant dense<0.000000e+00> : vector<8x128xf32>
    %260 = tpu.matmul %248, %259, %cst_70 {dimension_numbers = #tpu.dot_dimension_numbers<[1], [0], [0], [1], [0, 0, 1, 1], [], []>} : vector<8x640xf32>, vector<640x128xf32>, vector<8x128xf32> -> vector<8x128xf32>
    %261 = arith.addf %258, %260 : vector<8x128xf32>
    %262 = arith.index_cast %c6_i32 : i32 to index
    %c0_71 = arith.constant 0 : index
    %c0_72 = arith.constant 0 : index
    %263 = vector.load %arg7[%262, %c0_71, %c0_72] : memref<8x8x128xf32, #tpu.memory_space<vmem>>, vector<1x8x128xf32>
    %264 = vector.shape_cast %263 : vector<1x8x128xf32> to vector<8x128xf32>
    %265 = vector.shape_cast %261 : vector<8x128xf32> to vector<1x8x128xf32>
    tpu.vector_store %arg7[%262, %c0_71, %c0_72], %265 {strides = array<i32>} : memref<8x8x128xf32, #tpu.memory_space<vmem>>, vector<1x8x128xf32>,
    %266 = arith.subf %261, %255 : vector<8x128xf32>
    %267 = arith.addf %251, %266 : vector<8x128xf32>
    %268 = arith.mulf %251, %266 : vector<8x128xf32>
    %269 = arith.addf %252, %268 : vector<8x128xf32>
    %cst_73 = arith.constant 5.000000e-01 : f32
    %270 = vector.broadcast %cst_73 : f32 to vector<8x128xf32>
    %271 = arith.mulf %270, %266 : vector<8x128xf32>
    %272 = arith.mulf %271, %266 : vector<8x128xf32>
    %273 = arith.addf %269, %272 : vector<8x128xf32>
    %274 = vector.broadcast %3 : f32 to vector<8x128xf32>
    %275 = arith.mulf %251, %274 : vector<8x128xf32>
    %276 = arith.addf %253, %275 : vector<8x128xf32>
    %cst_74 = arith.constant 5.000000e-01 : f32
    %277 = vector.broadcast %cst_74 : f32 to vector<8x128xf32>
    %278 = arith.mulf %277, %266 : vector<8x128xf32>
    %279 = vector.broadcast %3 : f32 to vector<8x128xf32>
    %280 = arith.mulf %278, %279 : vector<8x128xf32>
    %281 = arith.addf %276, %280 : vector<8x128xf32>
    %282 = arith.mulf %250, %266 : vector<8x128xf32>
    %283 = arith.addf %254, %282 : vector<8x128xf32>
    %cst_75 = arith.constant 5.000000e-01 : f32
    %284 = arith.mulf %cst_75, %3 : f32
    %285 = vector.broadcast %284 : f32 to vector<8x128xf32>
    %286 = arith.mulf %285, %266 : vector<8x128xf32>
    %287 = arith.addf %283, %286 : vector<8x128xf32>
    %288 = tpu.concatenate %267, %273, %281, %287, %261 in 1 : vector<8x128xf32>, vector<8x128xf32>, vector<8x128xf32>, vector<8x128xf32>, vector<8x128xf32> -> vector<8x640xf32>
    %289 = vector.broadcast %3 : f32 to vector<8x128xf32>
    %290 = arith.addf %250, %289 : vector<8x128xf32>
    %c7_i32 = arith.constant 7 : i32
    %291 = vector.extract_strided_slice %288 {offsets = [0, 0], sizes = [8, 128], strides = [1, 1]} : vector<8x640xf32> to vector<8x128xf32>
    %292 = vector.extract_strided_slice %288 {offsets = [0, 128], sizes = [8, 128], strides = [1, 1]} : vector<8x640xf32> to vector<8x128xf32>
    %293 = vector.extract_strided_slice %288 {offsets = [0, 256], sizes = [8, 128], strides = [1, 1]} : vector<8x640xf32> to vector<8x128xf32>
    %294 = vector.extract_strided_slice %288 {offsets = [0, 384], sizes = [8, 128], strides = [1, 1]} : vector<8x640xf32> to vector<8x128xf32>
    %295 = vector.extract_strided_slice %288 {offsets = [0, 512], sizes = [8, 128], strides = [1, 1]} : vector<8x640xf32> to vector<8x128xf32>
    %296 = arith.index_cast %c7_i32 : i32 to index
    %c0_76 = arith.constant 0 : index
    %c0_77 = arith.constant 0 : index
    %297 = vector.load %arg2[%296, %c0_76, %c0_77] : memref<8x8x128xf32, #tpu.memory_space<vmem>>, vector<1x8x128xf32>
    %298 = vector.shape_cast %297 : vector<1x8x128xf32> to vector<8x128xf32>
    %c0_78 = arith.constant 0 : index
    %c0_79 = arith.constant 0 : index
    %299 = vector.load %arg3[%c0_78, %c0_79] : memref<640x128xf32, #tpu.memory_space<vmem>>, vector<640x128xf32>
    %cst_80 = arith.constant dense<0.000000e+00> : vector<8x128xf32>
    %300 = tpu.matmul %288, %299, %cst_80 {dimension_numbers = #tpu.dot_dimension_numbers<[1], [0], [0], [1], [0, 0, 1, 1], [], []>} : vector<8x640xf32>, vector<640x128xf32>, vector<8x128xf32> -> vector<8x128xf32>
    %301 = arith.addf %298, %300 : vector<8x128xf32>
    %302 = arith.index_cast %c7_i32 : i32 to index
    %c0_81 = arith.constant 0 : index
    %c0_82 = arith.constant 0 : index
    %303 = vector.load %arg7[%302, %c0_81, %c0_82] : memref<8x8x128xf32, #tpu.memory_space<vmem>>, vector<1x8x128xf32>
    %304 = vector.shape_cast %303 : vector<1x8x128xf32> to vector<8x128xf32>
    %305 = vector.shape_cast %301 : vector<8x128xf32> to vector<1x8x128xf32>
    tpu.vector_store %arg7[%302, %c0_81, %c0_82], %305 {strides = array<i32>} : memref<8x8x128xf32, #tpu.memory_space<vmem>>, vector<1x8x128xf32>,
    %306 = arith.subf %301, %295 : vector<8x128xf32>
    %307 = arith.addf %291, %306 : vector<8x128xf32>
    %308 = arith.mulf %291, %306 : vector<8x128xf32>
    %309 = arith.addf %292, %308 : vector<8x128xf32>
    %cst_83 = arith.constant 5.000000e-01 : f32
    %310 = vector.broadcast %cst_83 : f32 to vector<8x128xf32>
    %311 = arith.mulf %310, %306 : vector<8x128xf32>
    %312 = arith.mulf %311, %306 : vector<8x128xf32>
    %313 = arith.addf %309, %312 : vector<8x128xf32>
    %314 = vector.broadcast %3 : f32 to vector<8x128xf32>
    %315 = arith.mulf %291, %314 : vector<8x128xf32>
    %316 = arith.addf %293, %315 : vector<8x128xf32>
    %cst_84 = arith.constant 5.000000e-01 : f32
    %317 = vector.broadcast %cst_84 : f32 to vector<8x128xf32>
    %318 = arith.mulf %317, %306 : vector<8x128xf32>
    %319 = vector.broadcast %3 : f32 to vector<8x128xf32>
    %320 = arith.mulf %318, %319 : vector<8x128xf32>
    %321 = arith.addf %316, %320 : vector<8x128xf32>
    %322 = arith.mulf %290, %306 : vector<8x128xf32>
    %323 = arith.addf %294, %322 : vector<8x128xf32>
    %cst_85 = arith.constant 5.000000e-01 : f32
    %324 = arith.mulf %cst_85, %3 : f32
    %325 = vector.broadcast %324 : f32 to vector<8x128xf32>
    %326 = arith.mulf %325, %306 : vector<8x128xf32>
    %327 = arith.addf %323, %326 : vector<8x128xf32>
    %328 = tpu.concatenate %307, %313, %321, %327, %301 in 1 : vector<8x128xf32>, vector<8x128xf32>, vector<8x128xf32>, vector<8x128xf32>, vector<8x128xf32> -> vector<8x640xf32>
    %329 = vector.broadcast %3 : f32 to vector<8x128xf32>
    %330 = arith.addf %290, %329 : vector<8x128xf32>
    %c8_i32_86 = arith.constant 8 : i32
    %c0_87 = arith.constant 0 : index
    %c0_88 = arith.constant 0 : index
    %331 = vector.load %arg8[%c0_87, %c0_88] : memref<8x640xf32, #tpu.memory_space<vmem>>, vector<8x640xf32>
    tpu.vector_store %arg8[%c0_87, %c0_88], %328 {strides = array<i32>} : memref<8x640xf32, #tpu.memory_space<vmem>>, vector<8x640xf32>,
    return
  }
  func.func @transform_0(%arg0: i32, %arg1: i32) -> (i32, i32, i32) {
    %c0_i32 = arith.constant 0 : i32
    %c0_i32_0 = arith.constant 0 : i32
    return %arg1, %arg0, %c0_i32 : i32, i32, i32
  }
  func.func @transform_1(%arg0: i32, %arg1: i32) -> (i32, i32) {
    %c0_i32 = arith.constant 0 : i32
    %c0_i32_0 = arith.constant 0 : i32
    %c0_i32_1 = arith.constant 0 : i32
    return %c0_i32, %c0_i32_0 : i32, i32
  }
  func.func @transform_2(%arg0: i32, %arg1: i32) -> (i32, i32) {
    %c0_i32 = arith.constant 0 : i32
    %c0_i32_0 = arith.constant 0 : i32
    return %arg0, %c0_i32 : i32, i32
  }
  func.func @transform_3(%arg0: i32, %arg1: i32) -> (i32, i32) {
    %c0_i32 = arith.constant 0 : i32
    %c0_i32_0 = arith.constant 0 : i32
    %c0_i32_1 = arith.constant 0 : i32
    return %c0_i32, %c0_i32_0 : i32, i32
  }
  func.func @transform_4(%arg0: i32, %arg1: i32) -> (i32, i32) {
    %c0_i32 = arith.constant 0 : i32
    %c0_i32_0 = arith.constant 0 : i32
    return %arg0, %c0_i32 : i32, i32
  }
  func.func @transform_5(%arg0: i32, %arg1: i32) -> (i32, i32, i32) {
    %c0_i32 = arith.constant 0 : i32
    %c0_i32_0 = arith.constant 0 : i32
    return %arg1, %arg0, %c0_i32 : i32, i32, i32
  }
  func.func @transform_6(%arg0: i32, %arg1: i32) -> (i32, i32) {
    %c0_i32 = arith.constant 0 : i32
    %c0_i32_0 = arith.constant 0 : i32
    return %arg0, %c0_i32 : i32, i32
  }
}

</mosaic_0001>

<llo_original>
// kernel: recurrent_sig_sequence.1
$region0: #{recurrent_sig_sequence.1}
  #allocation0 [shape = 'u32[]', space=smem, size = 0x4, offset = 0x4, fixed_abs, tag = 'smem constant byte address 0x4 - core index']
  #allocation1 [shape = 'u32[72,128]{1,0:T(1,128)}', space=vmem, size = 0x9000, scoped, tag = 'internal scratch']
  #allocation2 [shape = 'f32[1,1]{1,0:T(1,128)S(6)}', space=smem, size = 0x200, scoped, tag = 'scoped memory for recurrent_sig_sequence.1']
  %s0 = inlined_call_operand.vmem [shape: f32[8,8,128], index: 0, kind: input, shape index: {}]
  %s1 = inlined_call_operand.vmem [shape: f32[640,128], index: 1, kind: input, shape index: {}]
  %s2 = inlined_call_operand.vmem [shape: f32[8,128], index: 2, kind: input, shape index: {}]
  %s3 = inlined_call_operand.<no memory space> [shape: f32[1,1], index: 3, kind: input, shape index: {}]
  %s4 = inlined_call_operand.vmem [shape: f32[8,640], index: 4, kind: input, shape index: {}]
  %s5 = inlined_call_operand.vmem [shape: f32[8,8,128], index: 5, kind: output, shape index: {0}]
  %s6 = inlined_call_operand.vmem [shape: f32[8,640], index: 6, kind: output, shape index: {1}]
  %7 = xla_tuple %s5, %s6
  %s8 = sld [smem:[#allocation0]]
  $region42: #{recurrent_sig_sequence.1} parent=0
    _
  %s10 = ssub.s32 1, %s8
  %s11 = scalar_select 0, %s10, %s8
  %12 = sst [smem:[#allocation2]] %s3
  // Predicated region
  $region2: #{recurrent_sig_sequence.1} parent=0 // pred_check
    _
  $region3: #{recurrent_sig_sequence.1} parent=0 // pred_check_branch
    %14 = sbr.rel (0) target = $region5
  $region4: #{recurrent_sig_sequence.1} parent=0 // pred_region
    _
  $region5: #{recurrent_sig_sequence.1} parent=0 // pred_fallthru
    _
  // Predicated region
  $region6: #{recurrent_sig_sequence.1} parent=0 // pred_check
    _
  $region7: #{recurrent_sig_sequence.1} parent=0 // pred_check_branch
    %16 = sbr.rel (0) target = $region9
  $region8: #{recurrent_sig_sequence.1} parent=0 // pred_region
    _
  $region9: #{recurrent_sig_sequence.1} parent=0 // pred_fallthru
    _
  // Predicated region
  $region10: #{recurrent_sig_sequence.1} parent=0 // pred_check
    _
  $region11: #{recurrent_sig_sequence.1} parent=0 // pred_check_branch
    %18 = sbr.rel (0) target = $region13
  $region12: #{recurrent_sig_sequence.1} parent=0 // pred_region
    _
  $region13: #{recurrent_sig_sequence.1} parent=0 // pred_fallthru
    _
  // Predicated region
  $region14: #{recurrent_sig_sequence.1} parent=0 // pred_check
    _
  $region15: #{recurrent_sig_sequence.1} parent=0 // pred_check_branch
    %20 = sbr.rel (0) target = $region17
  $region16: #{recurrent_sig_sequence.1} parent=0 // pred_region
    _
  $region17: #{recurrent_sig_sequence.1} parent=0 // pred_fallthru
    _
  // Predicated region
  $region18: #{recurrent_sig_sequence.1} parent=0 // pred_check
    _
  $region19: #{recurrent_sig_sequence.1} parent=0 // pred_check_branch
    %22 = sbr.rel (0) target = $region21
  $region20: #{recurrent_sig_sequence.1} parent=0 // pred_region
    _
  $region21: #{recurrent_sig_sequence.1} parent=0 // pred_fallthru
    _
  %p23 = scmp.eq.s32.totalorder 0, 0
  // Predicated region
  $region22: #{recurrent_sig_sequence.1} parent=0 // pred_check
    %p24 = pneg %p23
  $region23: #{recurrent_sig_sequence.1} parent=0 // pred_check_branch
    %26 = sbr.rel (%p24) target = $region25
  $region24: #{recurrent_sig_sequence.1} parent=0 // pred_region
    %v27 = vld [vmem:[%s4] sm:$0xff]
    %v28 = vld [vmem:[%s4 + $0x8] sm:$0xff]
    %v29 = vld [vmem:[%s4 + $0x10] sm:$0xff]
    %v30 = vld [vmem:[%s4 + $0x18] sm:$0xff]
    %v31 = vld [vmem:[%s4 + $0x20] sm:$0xff]
    %32 = vst [vmem:[%s6] sm:$0xff] %v27
    %33 = vst [vmem:[%s6 + $0x8] sm:$0xff] %v28
    %34 = vst [vmem:[%s6 + $0x10] sm:$0xff] %v29
    %35 = vst [vmem:[%s6 + $0x18] sm:$0xff] %v30
    %36 = vst [vmem:[%s6 + $0x20] sm:$0xff] %v31
  $region25: #{recurrent_sig_sequence.1} parent=0 // pred_fallthru
    _
  %s37 = sld [smem:[#allocation2]]
  %s38 = smul.u32 0, 8
  %s39 = scvt.s32.f32 %s38
  %v40 = vld [vmem:[%s2] sm:$0xff]
  %s41 = smul.f32 %s39, %s37
  %v42 = vstv %s41
  %v43 = vadd.f32 %v40, %v42
  %v44 = vld [vmem:[%s6] sm:$0xff]
  %v45 = vld [vmem:[%s6 + $0x8] sm:$0xff]
  %v46 = vld [vmem:[%s6 + $0x10] sm:$0xff]
  %v47 = vld [vmem:[%s6 + $0x18] sm:$0xff]
  %v48 = vld [vmem:[%s6 + $0x20] sm:$0xff]
  %v49 = vld [vmem:[%s0] sm:$0xff]
  %v50 = vld [vmem:[%s1] sm:$0xff]
  %v51 = vld [vmem:[%s1 + $0x8] sm:$0xff]
  %v52 = vld [vmem:[%s1 + $0x10] sm:$0xff]
  %v53 = vld [vmem:[%s1 + $0x18] sm:$0xff]
  %v54 = vld [vmem:[%s1 + $0x20] sm:$0xff]
  %v55 = vld [vmem:[%s1 + $0x28] sm:$0xff]
  %v56 = vld [vmem:[%s1 + $0x30] sm:$0xff]
  %v57 = vld [vmem:[%s1 + $0x38] sm:$0xff]
  %v58 = vld [vmem:[%s1 + $0x40] sm:$0xff]
  %v59 = vld [vmem:[%s1 + $0x48] sm:$0xff]
  %v60 = vld [vmem:[%s1 + $0x50] sm:$0xff]
  %v61 = vld [vmem:[%s1 + $0x58] sm:$0xff]
  %v62 = vld [vmem:[%s1 + $0x60] sm:$0xff]
  %v63 = vld [vmem:[%s1 + $0x68] sm:$0xff]
  %v64 = vld [vmem:[%s1 + $0x70] sm:$0xff]
  %v65 = vld [vmem:[%s1 + $0x78] sm:$0xff]
  %v66 = vld [vmem:[%s1 + $0x80] sm:$0xff]
  %v67 = vld [vmem:[%s1 + $0x88] sm:$0xff]
  %v68 = vld [vmem:[%s1 + $0x90] sm:$0xff]
  %v69 = vld [vmem:[%s1 + $0x98] sm:$0xff]
  %v70 = vld [vmem:[%s1 + $0xa0] sm:$0xff]
  %v71 = vld [vmem:[%s1 + $0xa8] sm:$0xff]
  %v72 = vld [vmem:[%s1 + $0xb0] sm:$0xff]
  %v73 = vld [vmem:[%s1 + $0xb8] sm:$0xff]
  %v74 = vld [vmem:[%s1 + $0xc0] sm:$0xff]
  %v75 = vld [vmem:[%s1 + $0xc8] sm:$0xff]
  %v76 = vld [vmem:[%s1 + $0xd0] sm:$0xff]
  %v77 = vld [vmem:[%s1 + $0xd8] sm:$0xff]
  %v78 = vld [vmem:[%s1 + $0xe0] sm:$0xff]
  %v79 = vld [vmem:[%s1 + $0xe8] sm:$0xff]
  %v80 = vld [vmem:[%s1 + $0xf0] sm:$0xff]
  %v81 = vld [vmem:[%s1 + $0xf8] sm:$0xff]
  %v82 = vld [vmem:[%s1 + $0x100] sm:$0xff]
  %v83 = vld [vmem:[%s1 + $0x108] sm:$0xff]
  %v84 = vld [vmem:[%s1 + $0x110] sm:$0xff]
  %v85 = vld [vmem:[%s1 + $0x118] sm:$0xff]
  %v86 = vld [vmem:[%s1 + $0x120] sm:$0xff]
  %v87 = vld [vmem:[%s1 + $0x128] sm:$0xff]
  %v88 = vld [vmem:[%s1 + $0x130] sm:$0xff]
  %v89 = vld [vmem:[%s1 + $0x138] sm:$0xff]
  %v90 = vld [vmem:[%s1 + $0x140] sm:$0xff]
  %v91 = vld [vmem:[%s1 + $0x148] sm:$0xff]
  %v92 = vld [vmem:[%s1 + $0x150] sm:$0xff]
  %v93 = vld [vmem:[%s1 + $0x158] sm:$0xff]
  %v94 = vld [vmem:[%s1 + $0x160] sm:$0xff]
  %v95 = vld [vmem:[%s1 + $0x168] sm:$0xff]
  %v96 = vld [vmem:[%s1 + $0x170] sm:$0xff]
  %v97 = vld [vmem:[%s1 + $0x178] sm:$0xff]
  %v98 = vld [vmem:[%s1 + $0x180] sm:$0xff]
  %v99 = vld [vmem:[%s1 + $0x188] sm:$0xff]
  %v100 = vld [vmem:[%s1 + $0x190] sm:$0xff]
  %v101 = vld [vmem:[%s1 + $0x198] sm:$0xff]
  %v102 = vld [vmem:[%s1 + $0x1a0] sm:$0xff]
  %v103 = vld [vmem:[%s1 + $0x1a8] sm:$0xff]
  %v104 = vld [vmem:[%s1 + $0x1b0] sm:$0xff]
  %v105 = vld [vmem:[%s1 + $0x1b8] sm:$0xff]
  %v106 = vld [vmem:[%s1 + $0x1c0] sm:$0xff]
  %v107 = vld [vmem:[%s1 + $0x1c8] sm:$0xff]
  %v108 = vld [vmem:[%s1 + $0x1d0] sm:$0xff]
  %v109 = vld [vmem:[%s1 + $0x1d8] sm:$0xff]
  %v110 = vld [vmem:[%s1 + $0x1e0] sm:$0xff]
  %v111 = vld [vmem:[%s1 + $0x1e8] sm:$0xff]
  %v112 = vld [vmem:[%s1 + $0x1f0] sm:$0xff]
  %v113 = vld [vmem:[%s1 + $0x1f8] sm:$0xff]
  %v114 = vld [vmem:[%s1 + $0x200] sm:$0xff]
  %v115 = vld [vmem:[%s1 + $0x208] sm:$0xff]
  %v116 = vld [vmem:[%s1 + $0x210] sm:$0xff]
  %v117 = vld [vmem:[%s1 + $0x218] sm:$0xff]
  %v118 = vld [vmem:[%s1 + $0x220] sm:$0xff]
  %v119 = vld [vmem:[%s1 + $0x228] sm:$0xff]
  %v120 = vld [vmem:[%s1 + $0x230] sm:$0xff]
  %v121 = vld [vmem:[%s1 + $0x238] sm:$0xff]
  %v122 = vld [vmem:[%s1 + $0x240] sm:$0xff]
  %v123 = vld [vmem:[%s1 + $0x248] sm:$0xff]
  %v124 = vld [vmem:[%s1 + $0x250] sm:$0xff]
  %v125 = vld [vmem:[%s1 + $0x258] sm:$0xff]
  %v126 = vld [vmem:[%s1 + $0x260] sm:$0xff]
  %v127 = vld [vmem:[%s1 + $0x268] sm:$0xff]
  %v128 = vld [vmem:[%s1 + $0x270] sm:$0xff]
  %v129 = vld [vmem:[%s1 + $0x278] sm:$0xff]
  %130 = vmatpush.msra.mxu0 %v65
  %131 = vmatpush.msra.mxu0 %v64
  %132 = vmatpush.msra.mxu0 %v63
  %133 = vmatpush.msra.mxu0 %v62
  %134 = vmatpush.msra.mxu0 %v61
  %135 = vmatpush.msra.mxu0 %v60
  %136 = vmatpush.msra.mxu0 %v59
  %137 = vmatpush.msra.mxu0 %v58
  %138 = vmatpush.msra.mxu0 %v57
  %139 = vmatpush.msra.mxu0 %v56
  %140 = vmatpush.msra.mxu0 %v55
  %141 = vmatpush.msra.mxu0 %v54
  %142 = vmatpush.msra.mxu0 %v53
  %143 = vmatpush.msra.mxu0 %v52
  %144 = vmatpush.msra.mxu0 %v51
  %145 = vmatpush.msra.mxu0 %v50
  %146 = vmatmul.f32.gmra.mxu0 %v44
  %v147 = vpop.f32.mrf.mxu0
  %v148 = vadd.f32 0.0, %v147
  %149 = vdwg.mxu0
  %150 = vmatpush.msra.mxu0 %v81
  %151 = vmatpush.msra.mxu0 %v80
  %152 = vmatpush.msra.mxu0 %v79
  %153 = vmatpush.msra.mxu0 %v78
  %154 = vmatpush.msra.mxu0 %v77
  %155 = vmatpush.msra.mxu0 %v76
  %156 = vmatpush.msra.mxu0 %v75
  %157 = vmatpush.msra.mxu0 %v74
  %158 = vmatpush.msra.mxu0 %v73
  %159 = vmatpush.msra.mxu0 %v72
  %160 = vmatpush.msra.mxu0 %v71
  %161 = vmatpush.msra.mxu0 %v70
  %162 = vmatpush.msra.mxu0 %v69
  %163 = vmatpush.msra.mxu0 %v68
  %164 = vmatpush.msra.mxu0 %v67
  %165 = vmatpush.msra.mxu0 %v66
  %166 = vmatmul.f32.gmra.mxu0 %v45
  %v167 = vpop.f32.mrf.mxu0
  %v168 = vadd.f32 %v148, %v167
  %169 = vdwg.mxu0
  %170 = vmatpush.msra.mxu0 %v97
  %171 = vmatpush.msra.mxu0 %v96
  %172 = vmatpush.msra.mxu0 %v95
  %173 = vmatpush.msra.mxu0 %v94
  %174 = vmatpush.msra.mxu0 %v93
  %175 = vmatpush.msra.mxu0 %v92
  %176 = vmatpush.msra.mxu0 %v91
  %177 = vmatpush.msra.mxu0 %v90
  %178 = vmatpush.msra.mxu0 %v89
  %179 = vmatpush.msra.mxu0 %v88
  %180 = vmatpush.msra.mxu0 %v87
  %181 = vmatpush.msra.mxu0 %v86
  %182 = vmatpush.msra.mxu0 %v85
  %183 = vmatpush.msra.mxu0 %v84
  %184 = vmatpush.msra.mxu0 %v83
  %185 = vmatpush.msra.mxu0 %v82
  %186 = vmatmul.f32.gmra.mxu0 %v46
  %v187 = vpop.f32.mrf.mxu0
  %v188 = vadd.f32 %v168, %v187
  %189 = vdwg.mxu0
  %190 = vmatpush.msra.mxu0 %v113
  %191 = vmatpush.msra.mxu0 %v112
  %192 = vmatpush.msra.mxu0 %v111
  %193 = vmatpush.msra.mxu0 %v110
  %194 = vmatpush.msra.mxu0 %v109
  %195 = vmatpush.msra.mxu0 %v108
  %196 = vmatpush.msra.mxu0 %v107
  %197 = vmatpush.msra.mxu0 %v106
  %198 = vmatpush.msra.mxu0 %v105
  %199 = vmatpush.msra.mxu0 %v104
  %200 = vmatpush.msra.mxu0 %v103
  %201 = vmatpush.msra.mxu0 %v102
  %202 = vmatpush.msra.mxu0 %v101
  %203 = vmatpush.msra.mxu0 %v100
  %204 = vmatpush.msra.mxu0 %v99
  %205 = vmatpush.msra.mxu0 %v98
  %206 = vmatmul.f32.gmra.mxu0 %v47
  %v207 = vpop.f32.mrf.mxu0
  %v208 = vadd.f32 %v188, %v207
  %209 = vdwg.mxu0
  %210 = vmatpush.msra.mxu0 %v129
  %211 = vmatpush.msra.mxu0 %v128
  %212 = vmatpush.msra.mxu0 %v127
  %213 = vmatpush.msra.mxu0 %v126
  %214 = vmatpush.msra.mxu0 %v125
  %215 = vmatpush.msra.mxu0 %v124
  %216 = vmatpush.msra.mxu0 %v123
  %217 = vmatpush.msra.mxu0 %v122
  %218 = vmatpush.msra.mxu0 %v121
  %219 = vmatpush.msra.mxu0 %v120
  %220 = vmatpush.msra.mxu0 %v119
  %221 = vmatpush.msra.mxu0 %v118
  %222 = vmatpush.msra.mxu0 %v117
  %223 = vmatpush.msra.mxu0 %v116
  %224 = vmatpush.msra.mxu0 %v115
  %225 = vmatpush.msra.mxu0 %v114
  %226 = vmatmul.f32.gmra.mxu0 %v48
  %v227 = vpop.f32.mrf.mxu0
  %v228 = vadd.f32 %v208, %v227
  %229 = vdwg.mxu0
  %v230 = vadd.f32 %v49, %v228
  %231 = vst [vmem:[%s5] sm:$0xff] %v230
  %v232 = vsub.f32 %v230, %v48
  %v233 = vadd.f32 %v44, %v232
  %v234 = vmul.f32 %v44, %v232
  %v235 = vadd.f32 %v45, %v234
  %v236 = vmul.f32 %v232, 0.5
  %v237 = vmul.f32 %v236, %v232
  %v238 = vadd.f32 %v235, %v237
  %v239 = vstv %s37
  %v240 = vmul.f32 %v44, %v239
  %v241 = vadd.f32 %v46, %v240
  %v242 = vmul.f32 %v236, %v239
  %v243 = vadd.f32 %v241, %v242
  %v244 = vmul.f32 %v43, %v232
  %v245 = vadd.f32 %v47, %v244
  %s246 = smul.f32 %s37, 0.5
  %v247 = vstv %s246
  %v248 = vmul.f32 %v247, %v232
  %v249 = vadd.f32 %v245, %v248
  %v250 = vadd.f32 %v43, %v239
  %s251 = scalar_lea.vmem %s0, 8
  %v252 = vld [vmem:[%s251] sm:$0xff]
  %v253 = vld [vmem:[%s1] sm:$0xff]
  %v254 = vld [vmem:[%s1 + $0x8] sm:$0xff]
  %v255 = vld [vmem:[%s1 + $0x10] sm:$0xff]
  %v256 = vld [vmem:[%s1 + $0x18] sm:$0xff]
  %v257 = vld [vmem:[%s1 + $0x20] sm:$0xff]
  %v258 = vld [vmem:[%s1 + $0x28] sm:$0xff]
  %v259 = vld [vmem:[%s1 + $0x30] sm:$0xff]
  %v260 = vld [vmem:[%s1 + $0x38] sm:$0xff]
  %v261 = vld [vmem:[%s1 + $0x40] sm:$0xff]
  %v262 = vld [vmem:[%s1 + $0x48] sm:$0xff]
  %v263 = vld [vmem:[%s1 + $0x50] sm:$0xff]
  %v264 = vld [vmem:[%s1 + $0x58] sm:$0xff]
  %v265 = vld [vmem:[%s1 + $0x60] sm:$0xff]
  %v266 = vld [vmem:[%s1 + $0x68] sm:$0xff]
  %v267 = vld [vmem:[%s1 + $0x70] sm:$0xff]
  %v268 = vld [vmem:[%s1 + $0x78] sm:$0xff]
  %v269 = vld [vmem:[%s1 + $0x80] sm:$0xff]
  %v270 = vld [vmem:[%s1 + $0x88] sm:$0xff]
  %v271 = vld [vmem:[%s1 + $0x90] sm:$0xff]
  %v272 = vld [vmem:[%s1 + $0x98] sm:$0xff]
  %v273 = vld [vmem:[%s1 + $0xa0] sm:$0xff]
  %v274 = vld [vmem:[%s1 + $0xa8] sm:$0xff]
  %v275 = vld [vmem:[%s1 + $0xb0] sm:$0xff]
  %v276 = vld [vmem:[%s1 + $0xb8] sm:$0xff]
  %v277 = vld [vmem:[%s1 + $0xc0] sm:$0xff]
  %v278 = vld [vmem:[%s1 + $0xc8] sm:$0xff]
  %v279 = vld [vmem:[%s1 + $0xd0] sm:$0xff]
  %v280 = vld [vmem:[%s1 + $0xd8] sm:$0xff]
  %v281 = vld [vmem:[%s1 + $0xe0] sm:$0xff]
  %v282 = vld [vmem:[%s1 + $0xe8] sm:$0xff]
  %v283 = vld [vmem:[%s1 + $0xf0] sm:$0xff]
  %v284 = vld [vmem:[%s1 + $0xf8] sm:$0xff]
  %v285 = vld [vmem:[%s1 + $0x100] sm:$0xff]
  %v286 = vld [vmem:[%s1 + $0x108] sm:$0xff]
  %v287 = vld [vmem:[%s1 + $0x110] sm:$0xff]
  %v288 = vld [vmem:[%s1 + $0x118] sm:$0xff]
  %v289 = vld [vmem:[%s1 + $0x120] sm:$0xff]
  %v290 = vld [vmem:[%s1 + $0x128] sm:$0xff]
  %v291 = vld [vmem:[%s1 + $0x130] sm:$0xff]
  %v292 = vld [vmem:[%s1 + $0x138] sm:$0xff]
  %v293 = vld [vmem:[%s1 + $0x140] sm:$0xff]
  %v294 = vld [vmem:[%s1 + $0x148] sm:$0xff]
  %v295 = vld [vmem:[%s1 + $0x150] sm:$0xff]
  %v296 = vld [vmem:[%s1 + $0x158] sm:$0xff]
  %v297 = vld [vmem:[%s1 + $0x160] sm:$0xff]
  %v298 = vld [vmem:[%s1 + $0x168] sm:$0xff]
  %v299 = vld [vmem:[%s1 + $0x170] sm:$0xff]
  %v300 = vld [vmem:[%s1 + $0x178] sm:$0xff]
  %v301 = vld [vmem:[%s1 + $0x180] sm:$0xff]
  %v302 = vld [vmem:[%s1 + $0x188] sm:$0xff]
  %v303 = vld [vmem:[%s1 + $0x190] sm:$0xff]
  %v304 = vld [vmem:[%s1 + $0x198] sm:$0xff]
  %v305 = vld [vmem:[%s1 + $0x1a0] sm:$0xff]
  %v306 = vld [vmem:[%s1 + $0x1a8] sm:$0xff]
  %v307 = vld [vmem:[%s1 + $0x1b0] sm:$0xff]
  %v308 = vld [vmem:[%s1 + $0x1b8] sm:$0xff]
  %v309 = vld [vmem:[%s1 + $0x1c0] sm:$0xff]
  %v310 = vld [vmem:[%s1 + $0x1c8] sm:$0xff]
  %v311 = vld [vmem:[%s1 + $0x1d0] sm:$0xff]
  %v312 = vld [vmem:[%s1 + $0x1d8] sm:$0xff]
  %v313 = vld [vmem:[%s1 + $0x1e0] sm:$0xff]
  %v314 = vld [vmem:[%s1 + $0x1e8] sm:$0xff]
  %v315 = vld [vmem:[%s1 + $0x1f0] sm:$0xff]
  %v316 = vld [vmem:[%s1 + $0x1f8] sm:$0xff]
  %v317 = vld [vmem:[%s1 + $0x200] sm:$0xff]
  %v318 = vld [vmem:[%s1 + $0x208] sm:$0xff]
  %v319 = vld [vmem:[%s1 + $0x210] sm:$0xff]
  %v320 = vld [vmem:[%s1 + $0x218] sm:$0xff]
  %v321 = vld [vmem:[%s1 + $0x220] sm:$0xff]
  %v322 = vld [vmem:[%s1 + $0x228] sm:$0xff]
  %v323 = vld [vmem:[%s1 + $0x230] sm:$0xff]
  %v324 = vld [vmem:[%s1 + $0x238] sm:$0xff]
  %v325 = vld [vmem:[%s1 + $0x240] sm:$0xff]
  %v326 = vld [vmem:[%s1 + $0x248] sm:$0xff]
  %v327 = vld [vmem:[%s1 + $0x250] sm:$0xff]
  %v328 = vld [vmem:[%s1 + $0x258] sm:$0xff]
  %v329 = vld [vmem:[%s1 + $0x260] sm:$0xff]
  %v330 = vld [vmem:[%s1 + $0x268] sm:$0xff]
  %v331 = vld [vmem:[%s1 + $0x270] sm:$0xff]
  %v332 = vld [vmem:[%s1 + $0x278] sm:$0xff]
  %333 = vmatpush.msra.mxu0 %v268
  %334 = vmatpush.msra.mxu0 %v267
  %335 = vmatpush.msra.mxu0 %v266
  %336 = vmatpush.msra.mxu0 %v265
  %337 = vmatpush.msra.mxu0 %v264
  %338 = vmatpush.msra.mxu0 %v263
  %339 = vmatpush.msra.mxu0 %v262
  %340 = vmatpush.msra.mxu0 %v261
  %341 = vmatpush.msra.mxu0 %v260
  %342 = vmatpush.msra.mxu0 %v259
  %343 = vmatpush.msra.mxu0 %v258
  %344 = vmatpush.msra.mxu0 %v257
  %345 = vmatpush.msra.mxu0 %v256
  %346 = vmatpush.msra.mxu0 %v255
  %347 = vmatpush.msra.mxu0 %v254
  %348 = vmatpush.msra.mxu0 %v253
  %349 = vmatmul.f32.gmra.mxu0 %v233
  %v350 = vpop.f32.mrf.mxu0
  %v351 = vadd.f32 0.0, %v350
  %352 = vdwg.mxu0
  %353 = vmatpush.msra.mxu0 %v284
  %354 = vmatpush.msra.mxu0 %v283
  %355 = vmatpush.msra.mxu0 %v282
  %356 = vmatpush.msra.mxu0 %v281
  %357 = vmatpush.msra.mxu0 %v280
  %358 = vmatpush.msra.mxu0 %v279
  %359 = vmatpush.msra.mxu0 %v278
  %360 = vmatpush.msra.mxu0 %v277
  %361 = vmatpush.msra.mxu0 %v276
  %362 = vmatpush.msra.mxu0 %v275
  %363 = vmatpush.msra.mxu0 %v274
  %364 = vmatpush.msra.mxu0 %v273
  %365 = vmatpush.msra.mxu0 %v272
  %366 = vmatpush.msra.mxu0 %v271
  %367 = vmatpush.msra.mxu0 %v270
  %368 = vmatpush.msra.mxu0 %v269
  %369 = vmatmul.f32.gmra.mxu0 %v238
  %v370 = vpop.f32.mrf.mxu0
  %v371 = vadd.f32 %v351, %v370
  %372 = vdwg.mxu0
  %373 = vmatpush.msra.mxu0 %v300
  %374 = vmatpush.msra.mxu0 %v299
  %375 = vmatpush.msra.mxu0 %v298
  %376 = vmatpush.msra.mxu0 %v297
  %377 = vmatpush.msra.mxu0 %v296
  %378 = vmatpush.msra.mxu0 %v295
  %379 = vmatpush.msra.mxu0 %v294
  %380 = vmatpush.msra.mxu0 %v293
  %381 = vmatpush.msra.mxu0 %v292
  %382 = vmatpush.msra.mxu0 %v291
  %383 = vmatpush.msra.mxu0 %v290
  %384 = vmatpush.msra.mxu0 %v289
  %385 = vmatpush.msra.mxu0 %v288
  %386 = vmatpush.msra.mxu0 %v287
  %387 = vmatpush.msra.mxu0 %v286
  %388 = vmatpush.msra.mxu0 %v285
  %389 = vmatmul.f32.gmra.mxu0 %v243
  %v390 = vpop.f32.mrf.mxu0
  %v391 = vadd.f32 %v371, %v390
  %392 = vdwg.mxu0
  %393 = vmatpush.msra.mxu0 %v316
  %394 = vmatpush.msra.mxu0 %v315
  %395 = vmatpush.msra.mxu0 %v314
  %396 = vmatpush.msra.mxu0 %v313
  %397 = vmatpush.msra.mxu0 %v312
  %398 = vmatpush.msra.mxu0 %v311
  %399 = vmatpush.msra.mxu0 %v310
  %400 = vmatpush.msra.mxu0 %v309
  %401 = vmatpush.msra.mxu0 %v308
  %402 = vmatpush.msra.mxu0 %v307
  %403 = vmatpush.msra.mxu0 %v306
  %404 = vmatpush.msra.mxu0 %v305
  %405 = vmatpush.msra.mxu0 %v304
  %406 = vmatpush.msra.mxu0 %v303
  %407 = vmatpush.msra.mxu0 %v302
  %408 = vmatpush.msra.mxu0 %v301
  %409 = vmatmul.f32.gmra.mxu0 %v249
  %v410 = vpop.f32.mrf.mxu0
  %v411 = vadd.f32 %v391, %v410
  %412 = vdwg.mxu0
  %413 = vmatpush.msra.mxu0 %v332
  %414 = vmatpush.msra.mxu0 %v331
  %415 = vmatpush.msra.mxu0 %v330
  %416 = vmatpush.msra.mxu0 %v329
  %417 = vmatpush.msra.mxu0 %v328
  %418 = vmatpush.msra.mxu0 %v327
  %419 = vmatpush.msra.mxu0 %v326
  %420 = vmatpush.msra.mxu0 %v325
  %421 = vmatpush.msra.mxu0 %v324
  %422 = vmatpush.msra.mxu0 %v323
  %423 = vmatpush.msra.mxu0 %v322
  %424 = vmatpush.msra.mxu0 %v321
  %425 = vmatpush.msra.mxu0 %v320
  %426 = vmatpush.msra.mxu0 %v319
  %427 = vmatpush.msra.mxu0 %v318
  %428 = vmatpush.msra.mxu0 %v317
  %429 = vmatmul.f32.gmra.mxu0 %v230
  %v430 = vpop.f32.mrf.mxu0
  %v431 = vadd.f32 %v411, %v430
  %432 = vdwg.mxu0
  %v433 = vadd.f32 %v252, %v431
  %s434 = scalar_lea.vmem %s5, 8
  %435 = vst [vmem:[%s434] sm:$0xff] %v433
  %v436 = vsub.f32 %v433, %v230
  %v437 = vadd.f32 %v233, %v436
  %v438 = vmul.f32 %v233, %v436
  %v439 = vadd.f32 %v238, %v438
  %v440 = vmul.f32 %v436, 0.5
  %v441 = vmul.f32 %v440, %v436
  %v442 = vadd.f32 %v439, %v441
  %v443 = vmul.f32 %v233, %v239
  %v444 = vadd.f32 %v243, %v443
  %v445 = vmul.f32 %v440, %v239
  %v446 = vadd.f32 %v444, %v445
  %v447 = vmul.f32 %v250, %v436
  %v448 = vadd.f32 %v249, %v447
  %v449 = vmul.f32 %v247, %v436
  %v450 = vadd.f32 %v448, %v449
  %v451 = vadd.f32 %v250, %v239
  %s452 = scalar_lea.vmem %s0, 16
  %v453 = vld [vmem:[%s452] sm:$0xff]
  %v454 = vld [vmem:[%s1] sm:$0xff]
  %v455 = vld [vmem:[%s1 + $0x8] sm:$0xff]
  %v456 = vld [vmem:[%s1 + $0x10] sm:$0xff]
  %v457 = vld [vmem:[%s1 + $0x18] sm:$0xff]
  %v458 = vld [vmem:[%s1 + $0x20] sm:$0xff]
  %v459 = vld [vmem:[%s1 + $0x28] sm:$0xff]
  %v460 = vld [vmem:[%s1 + $0x30] sm:$0xff]
  %v461 = vld [vmem:[%s1 + $0x38] sm:$0xff]
  %v462 = vld [vmem:[%s1 + $0x40] sm:$0xff]
  %v463 = vld [vmem:[%s1 + $0x48] sm:$0xff]
  %v464 = vld [vmem:[%s1 + $0x50] sm:$0xff]
  %v465 = vld [vmem:[%s1 + $0x58] sm:$0xff]
  %v466 = vld [vmem:[%s1 + $0x60] sm:$0xff]
  %v467 = vld [vmem:[%s1 + $0x68] sm:$0xff]
  %v468 = vld [vmem:[%s1 + $0x70] sm:$0xff]
  %v469 = vld [vmem:[%s1 + $0x78] sm:$0xff]
  %v470 = vld [vmem:[%s1 + $0x80] sm:$0xff]
  %v471 = vld [vmem:[%s1 + $0x88] sm:$0xff]
  %v472 = vld [vmem:[%s1 + $0x90] sm:$0xff]
  %v473 = vld [vmem:[%s1 + $0x98] sm:$0xff]
  %v474 = vld [vmem:[%s1 + $0xa0] sm:$0xff]
  %v475 = vld [vmem:[%s1 + $0xa8] sm:$0xff]
  %v476 = vld [vmem:[%s1 + $0xb0] sm:$0xff]
  %v477 = vld [vmem:[%s1 + $0xb8] sm:$0xff]
  %v478 = vld [vmem:[%s1 + $0xc0] sm:$0xff]
  %v479 = vld [vmem:[%s1 + $0xc8] sm:$0xff]
  %v480 = vld [vmem:[%s1 + $0xd0] sm:$0xff]
  %v481 = vld [vmem:[%s1 + $0xd8] sm:$0xff]
  %v482 = vld [vmem:[%s1 + $0xe0] sm:$0xff]
  %v483 = vld [vmem:[%s1 + $0xe8] sm:$0xff]
  %v484 = vld [vmem:[%s1 + $0xf0] sm:$0xff]
  %v485 = vld [vmem:[%s1 + $0xf8] sm:$0xff]
  %v486 = vld [vmem:[%s1 + $0x100] sm:$0xff]
  %v487 = vld [vmem:[%s1 + $0x108] sm:$0xff]
  %v488 = vld [vmem:[%s1 + $0x110] sm:$0xff]
  %v489 = vld [vmem:[%s1 + $0x118] sm:$0xff]
  %v490 = vld [vmem:[%s1 + $0x120] sm:$0xff]
  %v491 = vld [vmem:[%s1 + $0x128] sm:$0xff]
  %v492 = vld [vmem:[%s1 + $0x130] sm:$0xff]
  %v493 = vld [vmem:[%s1 + $0x138] sm:$0xff]
  %v494 = vld [vmem:[%s1 + $0x140] sm:$0xff]
  %v495 = vld [vmem:[%s1 + $0x148] sm:$0xff]
  %v496 = vld [vmem:[%s1 + $0x150] sm:$0xff]
  %v497 = vld [vmem:[%s1 + $0x158] sm:$0xff]
  %v498 = vld [vmem:[%s1 + $0x160] sm:$0xff]
  %v499 = vld [vmem:[%s1 + $0x168] sm:$0xff]
  %v500 = vld [vmem:[%s1 + $0x170] sm:$0xff]
  %v501 = vld [vmem:[%s1 + $0x178] sm:$0xff]
  %v502 = vld [vmem:[%s1 + $0x180] sm:$0xff]
  %v503 = vld [vmem:[%s1 + $0x188] sm:$0xff]
  %v504 = vld [vmem:[%s1 + $0x190] sm:$0xff]
  %v505 = vld [vmem:[%s1 + $0x198] sm:$0xff]
  %v506 = vld [vmem:[%s1 + $0x1a0] sm:$0xff]
  %v507 = vld [vmem:[%s1 + $0x1a8] sm:$0xff]
  %v508 = vld [vmem:[%s1 + $0x1b0] sm:$0xff]
  %v509 = vld [vmem:[%s1 + $0x1b8] sm:$0xff]
  %v510 = vld [vmem:[%s1 + $0x1c0] sm:$0xff]
  %v511 = vld [vmem:[%s1 + $0x1c8] sm:$0xff]
  %v512 = vld [vmem:[%s1 + $0x1d0] sm:$0xff]
  %v513 = vld [vmem:[%s1 + $0x1d8] sm:$0xff]
  %v514 = vld [vmem:[%s1 + $0x1e0] sm:$0xff]
  %v515 = vld [vmem:[%s1 + $0x1e8] sm:$0xff]
  %v516 = vld [vmem:[%s1 + $0x1f0] sm:$0xff]
  %v517 = vld [vmem:[%s1 + $0x1f8] sm:$0xff]
  %v518 = vld [vmem:[%s1 + $0x200] sm:$0xff]
  %v519 = vld [vmem:[%s1 + $0x208] sm:$0xff]
  %v520 = vld [vmem:[%s1 + $0x210] sm:$0xff]
  %v521 = vld [vmem:[%s1 + $0x218] sm:$0xff]
  %v522 = vld [vmem:[%s1 + $0x220] sm:$0xff]
  %v523 = vld [vmem:[%s1 + $0x228] sm:$0xff]
  %v524 = vld [vmem:[%s1 + $0x230] sm:$0xff]
  %v525 = vld [vmem:[%s1 + $0x238] sm:$0xff]
  %v526 = vld [vmem:[%s1 + $0x240] sm:$0xff]
  %v527 = vld [vmem:[%s1 + $0x248] sm:$0xff]
  %v528 = vld [vmem:[%s1 + $0x250] sm:$0xff]
  %v529 = vld [vmem:[%s1 + $0x258] sm:$0xff]
  %v530 = vld [vmem:[%s1 + $0x260] sm:$0xff]
  %v531 = vld [vmem:[%s1 + $0x268] sm:$0xff]
  %v532 = vld [vmem:[%s1 + $0x270] sm:$0xff]
  %v533 = vld [vmem:[%s1 + $0x278] sm:$0xff]
  %534 = vmatpush.msra.mxu0 %v469
  %535 = vmatpush.msra.mxu0 %v468
  %536 = vmatpush.msra.mxu0 %v467
  %537 = vmatpush.msra.mxu0 %v466
  %538 = vmatpush.msra.mxu0 %v465
  %539 = vmatpush.msra.mxu0 %v464
  %540 = vmatpush.msra.mxu0 %v463
  %541 = vmatpush.msra.mxu0 %v462
  %542 = vmatpush.msra.mxu0 %v461
  %543 = vmatpush.msra.mxu0 %v460
  %544 = vmatpush.msra.mxu0 %v459
  %545 = vmatpush.msra.mxu0 %v458
  %546 = vmatpush.msra.mxu0 %v457
  %547 = vmatpush.msra.mxu0 %v456
  %548 = vmatpush.msra.mxu0 %v455
  %549 = vmatpush.msra.mxu0 %v454
  %550 = vmatmul.f32.gmra.mxu0 %v437
  %v551 = vpop.f32.mrf.mxu0
  %v552 = vadd.f32 0.0, %v551
  %553 = vdwg.mxu0
  %554 = vmatpush.msra.mxu0 %v485
  %555 = vmatpush.msra.mxu0 %v484
  %556 = vmatpush.msra.mxu0 %v483
  %557 = vmatpush.msra.mxu0 %v482
  %558 = vmatpush.msra.mxu0 %v481
  %559 = vmatpush.msra.mxu0 %v480
  %560 = vmatpush.msra.mxu0 %v479
  %561 = vmatpush.msra.mxu0 %v478
  %562 = vmatpush.msra.mxu0 %v477
  %563 = vmatpush.msra.mxu0 %v476
  %564 = vmatpush.msra.mxu0 %v475
  %565 = vmatpush.msra.mxu0 %v474
  %566 = vmatpush.msra.mxu0 %v473
  %567 = vmatpush.msra.mxu0 %v472
  %568 = vmatpush.msra.mxu0 %v471
  %569 = vmatpush.msra.mxu0 %v470
  %570 = vmatmul.f32.gmra.mxu0 %v442
  %v571 = vpop.f32.mrf.mxu0
  %v572 = vadd.f32 %v552, %v571
  %573 = vdwg.mxu0
  %574 = vmatpush.msra.mxu0 %v501
  %575 = vmatpush.msra.mxu0 %v500
  %576 = vmatpush.msra.mxu0 %v499
  %577 = vmatpush.msra.mxu0 %v498
  %578 = vmatpush.msra.mxu0 %v497
  %579 = vmatpush.msra.mxu0 %v496
  %580 = vmatpush.msra.mxu0 %v495
  %581 = vmatpush.msra.mxu0 %v494
  %582 = vmatpush.msra.mxu0 %v493
  %583 = vmatpush.msra.mxu0 %v492
  %584 = vmatpush.msra.mxu0 %v491
  %585 = vmatpush.msra.mxu0 %v490
  %586 = vmatpush.msra.mxu0 %v489
  %587 = vmatpush.msra.mxu0 %v488
  %588 = vmatpush.msra.mxu0 %v487
  %589 = vmatpush.msra.mxu0 %v486
  %590 = vmatmul.f32.gmra.mxu0 %v446
  %v591 = vpop.f32.mrf.mxu0
  %v592 = vadd.f32 %v572, %v591
  %593 = vdwg.mxu0
  %594 = vmatpush.msra.mxu0 %v517
  %595 = vmatpush.msra.mxu0 %v516
  %596 = vmatpush.msra.mxu0 %v515
  %597 = vmatpush.msra.mxu0 %v514
  %598 = vmatpush.msra.mxu0 %v513
  %599 = vmatpush.msra.mxu0 %v512
  %600 = vmatpush.msra.mxu0 %v511
  %601 = vmatpush.msra.mxu0 %v510
  %602 = vmatpush.msra.mxu0 %v509
  %603 = vmatpush.msra.mxu0 %v508
  %604 = vmatpush.msra.mxu0 %v507
  %605 = vmatpush.msra.mxu0 %v506
  %606 = vmatpush.msra.mxu0 %v505
  %607 = vmatpush.msra.mxu0 %v504
  %608 = vmatpush.msra.mxu0 %v503
  %609 = vmatpush.msra.mxu0 %v502
  %610 = vmatmul.f32.gmra.mxu0 %v450
  %v611 = vpop.f32.mrf.mxu0
  %v612 = vadd.f32 %v592, %v611
  %613 = vdwg.mxu0
  %614 = vmatpush.msra.mxu0 %v533
  %615 = vmatpush.msra.mxu0 %v532
  %616 = vmatpush.msra.mxu0 %v531
  %617 = vmatpush.msra.mxu0 %v530
  %618 = vmatpush.msra.mxu0 %v529
  %619 = vmatpush.msra.mxu0 %v528
  %620 = vmatpush.msra.mxu0 %v527
  %621 = vmatpush.msra.mxu0 %v526
  %622 = vmatpush.msra.mxu0 %v525
  %623 = vmatpush.msra.mxu0 %v524
  %624 = vmatpush.msra.mxu0 %v523
  %625 = vmatpush.msra.mxu0 %v522
  %626 = vmatpush.msra.mxu0 %v521
  %627 = vmatpush.msra.mxu0 %v520
  %628 = vmatpush.msra.mxu0 %v519
  %629 = vmatpush.msra.mxu0 %v518
  %630 = vmatmul.f32.gmra.mxu0 %v433
  %v631 = vpop.f32.mrf.mxu0
  %v632 = vadd.f32 %v612, %v631
  %633 = vdwg.mxu0
  %v634 = vadd.f32 %v453, %v632
  %s635 = scalar_lea.vmem %s5, 16
  %636 = vst [vmem:[%s635] sm:$0xff] %v634
  %v637 = vsub.f32 %v634, %v433
  %v638 = vadd.f32 %v437, %v637
  %v639 = vmul.f32 %v437, %v637
  %v640 = vadd.f32 %v442, %v639
  %v641 = vmul.f32 %v637, 0.5
  %v642 = vmul.f32 %v641, %v637
  %v643 = vadd.f32 %v640, %v642
  %v644 = vmul.f32 %v437, %v239
  %v645 = vadd.f32 %v446, %v644
  %v646 = vmul.f32 %v641, %v239
  %v647 = vadd.f32 %v645, %v646
  %v648 = vmul.f32 %v451, %v637
  %v649 = vadd.f32 %v450, %v648
  %v650 = vmul.f32 %v247, %v637
  %v651 = vadd.f32 %v649, %v650
  %v652 = vadd.f32 %v451, %v239
  %s653 = scalar_lea.vmem %s0, 24
  %v654 = vld [vmem:[%s653] sm:$0xff]
  %v655 = vld [vmem:[%s1] sm:$0xff]
  %v656 = vld [vmem:[%s1 + $0x8] sm:$0xff]
  %v657 = vld [vmem:[%s1 + $0x10] sm:$0xff]
  %v658 = vld [vmem:[%s1 + $0x18] sm:$0xff]
  %v659 = vld [vmem:[%s1 + $0x20] sm:$0xff]
  %v660 = vld [vmem:[%s1 + $0x28] sm:$0xff]
  %v661 = vld [vmem:[%s1 + $0x30] sm:$0xff]
  %v662 = vld [vmem:[%s1 + $0x38] sm:$0xff]
  %v663 = vld [vmem:[%s1 + $0x40] sm:$0xff]
  %v664 = vld [vmem:[%s1 + $0x48] sm:$0xff]
  %v665 = vld [vmem:[%s1 + $0x50] sm:$0xff]
  %v666 = vld [vmem:[%s1 + $0x58] sm:$0xff]
  %v667 = vld [vmem:[%s1 + $0x60] sm:$0xff]
  %v668 = vld [vmem:[%s1 + $0x68] sm:$0xff]
  %v669 = vld [vmem:[%s1 + $0x70] sm:$0xff]
  %v670 = vld [vmem:[%s1 + $0x78] sm:$0xff]
  %v671 = vld [vmem:[%s1 + $0x80] sm:$0xff]
  %v672 = vld [vmem:[%s1 + $0x88] sm:$0xff]
  %v673 = vld [vmem:[%s1 + $0x90] sm:$0xff]
  %v674 = vld [vmem:[%s1 + $0x98] sm:$0xff]
  %v675 = vld [vmem:[%s1 + $0xa0] sm:$0xff]
  %v676 = vld [vmem:[%s1 + $0xa8] sm:$0xff]
  %v677 = vld [vmem:[%s1 + $0xb0] sm:$0xff]
  %v678 = vld [vmem:[%s1 + $0xb8] sm:$0xff]
  %v679 = vld [vmem:[%s1 + $0xc0] sm:$0xff]
  %v680 = vld [vmem:[%s1 + $0xc8] sm:$0xff]
  %v681 = vld [vmem:[%s1 + $0xd0] sm:$0xff]
  %v682 = vld [vmem:[%s1 + $0xd8] sm:$0xff]
  %v683 = vld [vmem:[%s1 + $0xe0] sm:$0xff]
  %v684 = vld [vmem:[%s1 + $0xe8] sm:$0xff]
  %v685 = vld [vmem:[%s1 + $0xf0] sm:$0xff]
  %v686 = vld [vmem:[%s1 + $0xf8] sm:$0xff]
  %v687 = vld [vmem:[%s1 + $0x100] sm:$0xff]
  %v688 = vld [vmem:[%s1 + $0x108] sm:$0xff]
  %v689 = vld [vmem:[%s1 + $0x110] sm:$0xff]
  %v690 = vld [vmem:[%s1 + $0x118] sm:$0xff]
  %v691 = vld [vmem:[%s1 + $0x120] sm:$0xff]
  %v692 = vld [vmem:[%s1 + $0x128] sm:$0xff]
  %v693 = vld [vmem:[%s1 + $0x130] sm:$0xff]
  %v694 = vld [vmem:[%s1 + $0x138] sm:$0xff]
  %v695 = vld [vmem:[%s1 + $0x140] sm:$0xff]
  %v696 = vld [vmem:[%s1 + $0x148] sm:$0xff]
  %v697 = vld [vmem:[%s1 + $0x150] sm:$0xff]
  %v698 = vld [vmem:[%s1 + $0x158] sm:$0xff]
  %v699 = vld [vmem:[%s1 + $0x160] sm:$0xff]
  %v700 = vld [vmem:[%s1 + $0x168] sm:$0xff]
  %v701 = vld [vmem:[%s1 + $0x170] sm:$0xff]
  %v702 = vld [vmem:[%s1 + $0x178] sm:$0xff]
  %v703 = vld [vmem:[%s1 + $0x180] sm:$0xff]
  %v704 = vld [vmem:[%s1 + $0x188] sm:$0xff]
  %v705 = vld [vmem:[%s1 + $0x190] sm:$0xff]
  %v706 = vld [vmem:[%s1 + $0x198] sm:$0xff]
  %v707 = vld [vmem:[%s1 + $0x1a0] sm:$0xff]
  %v708 = vld [vmem:[%s1 + $0x1a8] sm:$0xff]
  %v709 = vld [vmem:[%s1 + $0x1b0] sm:$0xff]
  %v710 = vld [vmem:[%s1 + $0x1b8] sm:$0xff]
  %v711 = vld [vmem:[%s1 + $0x1c0] sm:$0xff]
  %v712 = vld [vmem:[%s1 + $0x1c8] sm:$0xff]
  %v713 = vld [vmem:[%s1 + $0x1d0] sm:$0xff]
  %v714 = vld [vmem:[%s1 + $0x1d8] sm:$0xff]
  %v715 = vld [vmem:[%s1 + $0x1e0] sm:$0xff]
  %v716 = vld [vmem:[%s1 + $0x1e8] sm:$0xff]
  %v717 = vld [vmem:[%s1 + $0x1f0] sm:$0xff]
  %v718 = vld [vmem:[%s1 + $0x1f8] sm:$0xff]
  %v719 = vld [vmem:[%s1 + $0x200] sm:$0xff]
  %v720 = vld [vmem:[%s1 + $0x208] sm:$0xff]
  %v721 = vld [vmem:[%s1 + $0x210] sm:$0xff]
  %v722 = vld [vmem:[%s1 + $0x218] sm:$0xff]
  %v723 = vld [vmem:[%s1 + $0x220] sm:$0xff]
  %v724 = vld [vmem:[%s1 + $0x228] sm:$0xff]
  %v725 = vld [vmem:[%s1 + $0x230] sm:$0xff]
  %v726 = vld [vmem:[%s1 + $0x238] sm:$0xff]
  %v727 = vld [vmem:[%s1 + $0x240] sm:$0xff]
  %v728 = vld [vmem:[%s1 + $0x248] sm:$0xff]
  %v729 = vld [vmem:[%s1 + $0x250] sm:$0xff]
  %v730 = vld [vmem:[%s1 + $0x258] sm:$0xff]
  %v731 = vld [vmem:[%s1 + $0x260] sm:$0xff]
  %v732 = vld [vmem:[%s1 + $0x268] sm:$0xff]
  %v733 = vld [vmem:[%s1 + $0x270] sm:$0xff]
  %v734 = vld [vmem:[%s1 + $0x278] sm:$0xff]
  %735 = vmatpush.msra.mxu0 %v670
  %736 = vmatpush.msra.mxu0 %v669
  %737 = vmatpush.msra.mxu0 %v668
  %738 = vmatpush.msra.mxu0 %v667
  %739 = vmatpush.msra.mxu0 %v666
  %740 = vmatpush.msra.mxu0 %v665
  %741 = vmatpush.msra.mxu0 %v664
  %742 = vmatpush.msra.mxu0 %v663
  %743 = vmatpush.msra.mxu0 %v662
  %744 = vmatpush.msra.mxu0 %v661
  %745 = vmatpush.msra.mxu0 %v660
  %746 = vmatpush.msra.mxu0 %v659
  %747 = vmatpush.msra.mxu0 %v658
  %748 = vmatpush.msra.mxu0 %v657
  %749 = vmatpush.msra.mxu0 %v656
  %750 = vmatpush.msra.mxu0 %v655
  %751 = vmatmul.f32.gmra.mxu0 %v638
  %v752 = vpop.f32.mrf.mxu0
  %v753 = vadd.f32 0.0, %v752
  %754 = vdwg.mxu0
  %755 = vmatpush.msra.mxu0 %v686
  %756 = vmatpush.msra.mxu0 %v685
  %757 = vmatpush.msra.mxu0 %v684
  %758 = vmatpush.msra.mxu0 %v683
  %759 = vmatpush.msra.mxu0 %v682
  %760 = vmatpush.msra.mxu0 %v681
  %761 = vmatpush.msra.mxu0 %v680
  %762 = vmatpush.msra.mxu0 %v679
  %763 = vmatpush.msra.mxu0 %v678
  %764 = vmatpush.msra.mxu0 %v677
  %765 = vmatpush.msra.mxu0 %v676
  %766 = vmatpush.msra.mxu0 %v675
  %767 = vmatpush.msra.mxu0 %v674
  %768 = vmatpush.msra.mxu0 %v673
  %769 = vmatpush.msra.mxu0 %v672
  %770 = vmatpush.msra.mxu0 %v671
  %771 = vmatmul.f32.gmra.mxu0 %v643
  %v772 = vpop.f32.mrf.mxu0
  %v773 = vadd.f32 %v753, %v772
  %774 = vdwg.mxu0
  %775 = vmatpush.msra.mxu0 %v702
  %776 = vmatpush.msra.mxu0 %v701
  %777 = vmatpush.msra.mxu0 %v700
  %778 = vmatpush.msra.mxu0 %v699
  %779 = vmatpush.msra.mxu0 %v698
  %780 = vmatpush.msra.mxu0 %v697
  %781 = vmatpush.msra.mxu0 %v696
  %782 = vmatpush.msra.mxu0 %v695
  %783 = vmatpush.msra.mxu0 %v694
  %784 = vmatpush.msra.mxu0 %v693
  %785 = vmatpush.msra.mxu0 %v692
  %786 = vmatpush.msra.mxu0 %v691
  %787 = vmatpush.msra.mxu0 %v690
  %788 = vmatpush.msra.mxu0 %v689
  %789 = vmatpush.msra.mxu0 %v688
  %790 = vmatpush.msra.mxu0 %v687
  %791 = vmatmul.f32.gmra.mxu0 %v647
  %v792 = vpop.f32.mrf.mxu0
  %v793 = vadd.f32 %v773, %v792
  %794 = vdwg.mxu0
  %795 = vmatpush.msra.mxu0 %v718
  %796 = vmatpush.msra.mxu0 %v717
  %797 = vmatpush.msra.mxu0 %v716
  %798 = vmatpush.msra.mxu0 %v715
  %799 = vmatpush.msra.mxu0 %v714
  %800 = vmatpush.msra.mxu0 %v713
  %801 = vmatpush.msra.mxu0 %v712
  %802 = vmatpush.msra.mxu0 %v711
  %803 = vmatpush.msra.mxu0 %v710
  %804 = vmatpush.msra.mxu0 %v709
  %805 = vmatpush.msra.mxu0 %v708
  %806 = vmatpush.msra.mxu0 %v707
  %807 = vmatpush.msra.mxu0 %v706
  %808 = vmatpush.msra.mxu0 %v705
  %809 = vmatpush.msra.mxu0 %v704
  %810 = vmatpush.msra.mxu0 %v703
  %811 = vmatmul.f32.gmra.mxu0 %v651
  %v812 = vpop.f32.mrf.mxu0
  %v813 = vadd.f32 %v793, %v812
  %814 = vdwg.mxu0
  %815 = vmatpush.msra.mxu0 %v734
  %816 = vmatpush.msra.mxu0 %v733
  %817 = vmatpush.msra.mxu0 %v732
  %818 = vmatpush.msra.mxu0 %v731
  %819 = vmatpush.msra.mxu0 %v730
  %820 = vmatpush.msra.mxu0 %v729
  %821 = vmatpush.msra.mxu0 %v728
  %822 = vmatpush.msra.mxu0 %v727
  %823 = vmatpush.msra.mxu0 %v726
  %824 = vmatpush.msra.mxu0 %v725
  %825 = vmatpush.msra.mxu0 %v724
  %826 = vmatpush.msra.mxu0 %v723
  %827 = vmatpush.msra.mxu0 %v722
  %828 = vmatpush.msra.mxu0 %v721
  %829 = vmatpush.msra.mxu0 %v720
  %830 = vmatpush.msra.mxu0 %v719
  %831 = vmatmul.f32.gmra.mxu0 %v634
  %v832 = vpop.f32.mrf.mxu0
  %v833 = vadd.f32 %v813, %v832
  %834 = vdwg.mxu0
  %v835 = vadd.f32 %v654, %v833
  %s836 = scalar_lea.vmem %s5, 24
  %837 = vst [vmem:[%s836] sm:$0xff] %v835
  %v838 = vsub.f32 %v835, %v634
  %v839 = vadd.f32 %v638, %v838
  %v840 = vmul.f32 %v638, %v838
  %v841 = vadd.f32 %v643, %v840
  %v842 = vmul.f32 %v838, 0.5
  %v843 = vmul.f32 %v842, %v838
  %v844 = vadd.f32 %v841, %v843
  %v845 = vmul.f32 %v638, %v239
  %v846 = vadd.f32 %v647, %v845
  %v847 = vmul.f32 %v842, %v239
  %v848 = vadd.f32 %v846, %v847
  %v849 = vmul.f32 %v652, %v838
  %v850 = vadd.f32 %v651, %v849
  %v851 = vmul.f32 %v247, %v838
  %v852 = vadd.f32 %v850, %v851
  %v853 = vadd.f32 %v652, %v239
  %s854 = scalar_lea.vmem %s0, 32
  %v855 = vld [vmem:[%s854] sm:$0xff]
  %v856 = vld [vmem:[%s1] sm:$0xff]
  %v857 = vld [vmem:[%s1 + $0x8] sm:$0xff]
  %v858 = vld [vmem:[%s1 + $0x10] sm:$0xff]
  %v859 = vld [vmem:[%s1 + $0x18] sm:$0xff]
  %v860 = vld [vmem:[%s1 + $0x20] sm:$0xff]
  %v861 = vld [vmem:[%s1 + $0x28] sm:$0xff]
  %v862 = vld [vmem:[%s1 + $0x30] sm:$0xff]
  %v863 = vld [vmem:[%s1 + $0x38] sm:$0xff]
  %v864 = vld [vmem:[%s1 + $0x40] sm:$0xff]
  %v865 = vld [vmem:[%s1 + $0x48] sm:$0xff]
  %v866 = vld [vmem:[%s1 + $0x50] sm:$0xff]
  %v867 = vld [vmem:[%s1 + $0x58] sm:$0xff]
  %v868 = vld [vmem:[%s1 + $0x60] sm:$0xff]
  %v869 = vld [vmem:[%s1 + $0x68] sm:$0xff]
  %v870 = vld [vmem:[%s1 + $0x70] sm:$0xff]
  %v871 = vld [vmem:[%s1 + $0x78] sm:$0xff]
  %v872 = vld [vmem:[%s1 + $0x80] sm:$0xff]
  %v873 = vld [vmem:[%s1 + $0x88] sm:$0xff]
  %v874 = vld [vmem:[%s1 + $0x90] sm:$0xff]
  %v875 = vld [vmem:[%s1 + $0x98] sm:$0xff]
  %v876 = vld [vmem:[%s1 + $0xa0] sm:$0xff]
  %v877 = vld [vmem:[%s1 + $0xa8] sm:$0xff]
  %v878 = vld [vmem:[%s1 + $0xb0] sm:$0xff]
  %v879 = vld [vmem:[%s1 + $0xb8] sm:$0xff]
  %v880 = vld [vmem:[%s1 + $0xc0] sm:$0xff]
  %v881 = vld [vmem:[%s1 + $0xc8] sm:$0xff]
  %v882 = vld [vmem:[%s1 + $0xd0] sm:$0xff]
  %v883 = vld [vmem:[%s1 + $0xd8] sm:$0xff]
  %v884 = vld [vmem:[%s1 + $0xe0] sm:$0xff]
  %v885 = vld [vmem:[%s1 + $0xe8] sm:$0xff]
  %v886 = vld [vmem:[%s1 + $0xf0] sm:$0xff]
  %v887 = vld [vmem:[%s1 + $0xf8] sm:$0xff]
  %v888 = vld [vmem:[%s1 + $0x100] sm:$0xff]
  %v889 = vld [vmem:[%s1 + $0x108] sm:$0xff]
  %v890 = vld [vmem:[%s1 + $0x110] sm:$0xff]
  %v891 = vld [vmem:[%s1 + $0x118] sm:$0xff]
  %v892 = vld [vmem:[%s1 + $0x120] sm:$0xff]
  %v893 = vld [vmem:[%s1 + $0x128] sm:$0xff]
  %v894 = vld [vmem:[%s1 + $0x130] sm:$0xff]
  %v895 = vld [vmem:[%s1 + $0x138] sm:$0xff]
  %v896 = vld [vmem:[%s1 + $0x140] sm:$0xff]
  %v897 = vld [vmem:[%s1 + $0x148] sm:$0xff]
  %v898 = vld [vmem:[%s1 + $0x150] sm:$0xff]
  %v899 = vld [vmem:[%s1 + $0x158] sm:$0xff]
  %v900 = vld [vmem:[%s1 + $0x160] sm:$0xff]
  %v901 = vld [vmem:[%s1 + $0x168] sm:$0xff]
  %v902 = vld [vmem:[%s1 + $0x170] sm:$0xff]
  %v903 = vld [vmem:[%s1 + $0x178] sm:$0xff]
  %v904 = vld [vmem:[%s1 + $0x180] sm:$0xff]
  %v905 = vld [vmem:[%s1 + $0x188] sm:$0xff]
  %v906 = vld [vmem:[%s1 + $0x190] sm:$0xff]
  %v907 = vld [vmem:[%s1 + $0x198] sm:$0xff]
  %v908 = vld [vmem:[%s1 + $0x1a0] sm:$0xff]
  %v909 = vld [vmem:[%s1 + $0x1a8] sm:$0xff]
  %v910 = vld [vmem:[%s1 + $0x1b0] sm:$0xff]
  %v911 = vld [vmem:[%s1 + $0x1b8] sm:$0xff]
  %v912 = vld [vmem:[%s1 + $0x1c0] sm:$0xff]
  %v913 = vld [vmem:[%s1 + $0x1c8] sm:$0xff]
  %v914 = vld [vmem:[%s1 + $0x1d0] sm:$0xff]
  %v915 = vld [vmem:[%s1 + $0x1d8] sm:$0xff]
  %v916 = vld [vmem:[%s1 + $0x1e0] sm:$0xff]
  %v917 = vld [vmem:[%s1 + $0x1e8] sm:$0xff]
  %v918 = vld [vmem:[%s1 + $0x1f0] sm:$0xff]
  %v919 = vld [vmem:[%s1 + $0x1f8] sm:$0xff]
  %v920 = vld [vmem:[%s1 + $0x200] sm:$0xff]
  %v921 = vld [vmem:[%s1 + $0x208] sm:$0xff]
  %v922 = vld [vmem:[%s1 + $0x210] sm:$0xff]
  %v923 = vld [vmem:[%s1 + $0x218] sm:$0xff]
  %v924 = vld [vmem:[%s1 + $0x220] sm:$0xff]
  %v925 = vld [vmem:[%s1 + $0x228] sm:$0xff]
  %v926 = vld [vmem:[%s1 + $0x230] sm:$0xff]
  %v927 = vld [vmem:[%s1 + $0x238] sm:$0xff]
  %v928 = vld [vmem:[%s1 + $0x240] sm:$0xff]
  %v929 = vld [vmem:[%s1 + $0x248] sm:$0xff]
  %v930 = vld [vmem:[%s1 + $0x250] sm:$0xff]
  %v931 = vld [vmem:[%s1 + $0x258] sm:$0xff]
  %v932 = vld [vmem:[%s1 + $0x260] sm:$0xff]
  %v933 = vld [vmem:[%s1 + $0x268] sm:$0xff]
  %v934 = vld [vmem:[%s1 + $0x270] sm:$0xff]
  %v935 = vld [vmem:[%s1 + $0x278] sm:$0xff]
  %936 = vmatpush.msra.mxu0 %v871
  %937 = vmatpush.msra.mxu0 %v870
  %938 = vmatpush.msra.mxu0 %v869
  %939 = vmatpush.msra.mxu0 %v868
  %940 = vmatpush.msra.mxu0 %v867
  %941 = vmatpush.msra.mxu0 %v866
  %942 = vmatpush.msra.mxu0 %v865
  %943 = vmatpush.msra.mxu0 %v864
  %944 = vmatpush.msra.mxu0 %v863
  %945 = vmatpush.msra.mxu0 %v862
  %946 = vmatpush.msra.mxu0 %v861
  %947 = vmatpush.msra.mxu0 %v860
  %948 = vmatpush.msra.mxu0 %v859
  %949 = vmatpush.msra.mxu0 %v858
  %950 = vmatpush.msra.mxu0 %v857
  %951 = vmatpush.msra.mxu0 %v856
  %952 = vmatmul.f32.gmra.mxu0 %v839
  %v953 = vpop.f32.mrf.mxu0
  %v954 = vadd.f32 0.0, %v953
  %955 = vdwg.mxu0
  %956 = vmatpush.msra.mxu0 %v887
  %957 = vmatpush.msra.mxu0 %v886
  %958 = vmatpush.msra.mxu0 %v885
  %959 = vmatpush.msra.mxu0 %v884
  %960 = vmatpush.msra.mxu0 %v883
  %961 = vmatpush.msra.mxu0 %v882
  %962 = vmatpush.msra.mxu0 %v881
  %963 = vmatpush.msra.mxu0 %v880
  %964 = vmatpush.msra.mxu0 %v879
  %965 = vmatpush.msra.mxu0 %v878
  %966 = vmatpush.msra.mxu0 %v877
  %967 = vmatpush.msra.mxu0 %v876
  %968 = vmatpush.msra.mxu0 %v875
  %969 = vmatpush.msra.mxu0 %v874
  %970 = vmatpush.msra.mxu0 %v873
  %971 = vmatpush.msra.mxu0 %v872
  %972 = vmatmul.f32.gmra.mxu0 %v844
  %v973 = vpop.f32.mrf.mxu0
  %v974 = vadd.f32 %v954, %v973
  %975 = vdwg.mxu0
  %976 = vmatpush.msra.mxu0 %v903
  %977 = vmatpush.msra.mxu0 %v902
  %978 = vmatpush.msra.mxu0 %v901
  %979 = vmatpush.msra.mxu0 %v900
  %980 = vmatpush.msra.mxu0 %v899
  %981 = vmatpush.msra.mxu0 %v898
  %982 = vmatpush.msra.mxu0 %v897
  %983 = vmatpush.msra.mxu0 %v896
  %984 = vmatpush.msra.mxu0 %v895
  %985 = vmatpush.msra.mxu0 %v894
  %986 = vmatpush.msra.mxu0 %v893
  %987 = vmatpush.msra.mxu0 %v892
  %988 = vmatpush.msra.mxu0 %v891
  %989 = vmatpush.msra.mxu0 %v890
  %990 = vmatpush.msra.mxu0 %v889
  %991 = vmatpush.msra.mxu0 %v888
  %992 = vmatmul.f32.gmra.mxu0 %v848
  %v993 = vpop.f32.mrf.mxu0
  %v994 = vadd.f32 %v974, %v993
  %995 = vdwg.mxu0
  %996 = vmatpush.msra.mxu0 %v919
  %997 = vmatpush.msra.mxu0 %v918
  %998 = vmatpush.msra.mxu0 %v917
  %999 = vmatpush.msra.mxu0 %v916
  %1000 = vmatpush.msra.mxu0 %v915
  %1001 = vmatpush.msra.mxu0 %v914
  %1002 = vmatpush.msra.mxu0 %v913
  %1003 = vmatpush.msra.mxu0 %v912
  %1004 = vmatpush.msra.mxu0 %v911
  %1005 = vmatpush.msra.mxu0 %v910
  %1006 = vmatpush.msra.mxu0 %v909
  %1007 = vmatpush.msra.mxu0 %v908
  %1008 = vmatpush.msra.mxu0 %v907
  %1009 = vmatpush.msra.mxu0 %v906
  %1010 = vmatpush.msra.mxu0 %v905
  %1011 = vmatpush.msra.mxu0 %v904
  %1012 = vmatmul.f32.gmra.mxu0 %v852
  %v1013 = vpop.f32.mrf.mxu0
  %v1014 = vadd.f32 %v994, %v1013
  %1015 = vdwg.mxu0
  %1016 = vmatpush.msra.mxu0 %v935
  %1017 = vmatpush.msra.mxu0 %v934
  %1018 = vmatpush.msra.mxu0 %v933
  %1019 = vmatpush.msra.mxu0 %v932
  %1020 = vmatpush.msra.mxu0 %v931
  %1021 = vmatpush.msra.mxu0 %v930
  %1022 = vmatpush.msra.mxu0 %v929
  %1023 = vmatpush.msra.mxu0 %v928
  %1024 = vmatpush.msra.mxu0 %v927
  %1025 = vmatpush.msra.mxu0 %v926
  %1026 = vmatpush.msra.mxu0 %v925
  %1027 = vmatpush.msra.mxu0 %v924
  %1028 = vmatpush.msra.mxu0 %v923
  %1029 = vmatpush.msra.mxu0 %v922
  %1030 = vmatpush.msra.mxu0 %v921
  %1031 = vmatpush.msra.mxu0 %v920
  %1032 = vmatmul.f32.gmra.mxu0 %v835
  %v1033 = vpop.f32.mrf.mxu0
  %v1034 = vadd.f32 %v1014, %v1033
  %1035 = vdwg.mxu0
  %v1036 = vadd.f32 %v855, %v1034
  %s1037 = scalar_lea.vmem %s5, 32
  %1038 = vst [vmem:[%s1037] sm:$0xff] %v1036
  %v1039 = vsub.f32 %v1036, %v835
  %v1040 = vadd.f32 %v839, %v1039
  %v1041 = vmul.f32 %v839, %v1039
  %v1042 = vadd.f32 %v844, %v1041
  %v1043 = vmul.f32 %v1039, 0.5
  %v1044 = vmul.f32 %v1043, %v1039
  %v1045 = vadd.f32 %v1042, %v1044
  %v1046 = vmul.f32 %v839, %v239
  %v1047 = vadd.f32 %v848, %v1046
  %v1048 = vmul.f32 %v1043, %v239
  %v1049 = vadd.f32 %v1047, %v1048
  %v1050 = vmul.f32 %v853, %v1039
  %v1051 = vadd.f32 %v852, %v1050
  %v1052 = vmul.f32 %v247, %v1039
  %v1053 = vadd.f32 %v1051, %v1052
  %v1054 = vadd.f32 %v853, %v239
  %s1055 = scalar_lea.vmem %s0, 40
  %v1056 = vld [vmem:[%s1055] sm:$0xff]
  %v1057 = vld [vmem:[%s1] sm:$0xff]
  %v1058 = vld [vmem:[%s1 + $0x8] sm:$0xff]
  %v1059 = vld [vmem:[%s1 + $0x10] sm:$0xff]
  %v1060 = vld [vmem:[%s1 + $0x18] sm:$0xff]
  %v1061 = vld [vmem:[%s1 + $0x20] sm:$0xff]
  %v1062 = vld [vmem:[%s1 + $0x28] sm:$0xff]
  %v1063 = vld [vmem:[%s1 + $0x30] sm:$0xff]
  %v1064 = vld [vmem:[%s1 + $0x38] sm:$0xff]
  %v1065 = vld [vmem:[%s1 + $0x40] sm:$0xff]
  %v1066 = vld [vmem:[%s1 + $0x48] sm:$0xff]
  %v1067 = vld [vmem:[%s1 + $0x50] sm:$0xff]
  %v1068 = vld [vmem:[%s1 + $0x58] sm:$0xff]
  %v1069 = vld [vmem:[%s1 + $0x60] sm:$0xff]
  %v1070 = vld [vmem:[%s1 + $0x68] sm:$0xff]
  %v1071 = vld [vmem:[%s1 + $0x70] sm:$0xff]
  %v1072 = vld [vmem:[%s1 + $0x78] sm:$0xff]
  %v1073 = vld [vmem:[%s1 + $0x80] sm:$0xff]
  %v1074 = vld [vmem:[%s1 + $0x88] sm:$0xff]
  %v1075 = vld [vmem:[%s1 + $0x90] sm:$0xff]
  %v1076 = vld [vmem:[%s1 + $0x98] sm:$0xff]
  %v1077 = vld [vmem:[%s1 + $0xa0] sm:$0xff]
  %v1078 = vld [vmem:[%s1 + $0xa8] sm:$0xff]
  %v1079 = vld [vmem:[%s1 + $0xb0] sm:$0xff]
  %v1080 = vld [vmem:[%s1 + $0xb8] sm:$0xff]
  %v1081 = vld [vmem:[%s1 + $0xc0] sm:$0xff]
  %v1082 = vld [vmem:[%s1 + $0xc8] sm:$0xff]
  %v1083 = vld [vmem:[%s1 + $0xd0] sm:$0xff]
  %v1084 = vld [vmem:[%s1 + $0xd8] sm:$0xff]
  %v1085 = vld [vmem:[%s1 + $0xe0] sm:$0xff]
  %v1086 = vld [vmem:[%s1 + $0xe8] sm:$0xff]
  %v1087 = vld [vmem:[%s1 + $0xf0] sm:$0xff]
  %v1088 = vld [vmem:[%s1 + $0xf8] sm:$0xff]
  %v1089 = vld [vmem:[%s1 + $0x100] sm:$0xff]
  %v1090 = vld [vmem:[%s1 + $0x108] sm:$0xff]
  %v1091 = vld [vmem:[%s1 + $0x110] sm:$0xff]
  %v1092 = vld [vmem:[%s1 + $0x118] sm:$0xff]
  %v1093 = vld [vmem:[%s1 + $0x120] sm:$0xff]
  %v1094 = vld [vmem:[%s1 + $0x128] sm:$0xff]
  %v1095 = vld [vmem:[%s1 + $0x130] sm:$0xff]
  %v1096 = vld [vmem:[%s1 + $0x138] sm:$0xff]
  %v1097 = vld [vmem:[%s1 + $0x140] sm:$0xff]
  %v1098 = vld [vmem:[%s1 + $0x148] sm:$0xff]
  %v1099 = vld [vmem:[%s1 + $0x150] sm:$0xff]
  %v1100 = vld [vmem:[%s1 + $0x158] sm:$0xff]
  %v1101 = vld [vmem:[%s1 + $0x160] sm:$0xff]
  %v1102 = vld [vmem:[%s1 + $0x168] sm:$0xff]
  %v1103 = vld [vmem:[%s1 + $0x170] sm:$0xff]
  %v1104 = vld [vmem:[%s1 + $0x178] sm:$0xff]
  %v1105 = vld [vmem:[%s1 + $0x180] sm:$0xff]
  %v1106 = vld [vmem:[%s1 + $0x188] sm:$0xff]
  %v1107 = vld [vmem:[%s1 + $0x190] sm:$0xff]
  %v1108 = vld [vmem:[%s1 + $0x198] sm:$0xff]
  %v1109 = vld [vmem:[%s1 + $0x1a0] sm:$0xff]
  %v1110 = vld [vmem:[%s1 + $0x1a8] sm:$0xff]
  %v1111 = vld [vmem:[%s1 + $0x1b0] sm:$0xff]
  %v1112 = vld [vmem:[%s1 + $0x1b8] sm:$0xff]
  %v1113 = vld [vmem:[%s1 + $0x1c0] sm:$0xff]
  %v1114 = vld [vmem:[%s1 + $0x1c8] sm:$0xff]
  %v1115 = vld [vmem:[%s1 + $0x1d0] sm:$0xff]
  %v1116 = vld [vmem:[%s1 + $0x1d8] sm:$0xff]
  %v1117 = vld [vmem:[%s1 + $0x1e0] sm:$0xff]
  %v1118 = vld [vmem:[%s1 + $0x1e8] sm:$0xff]
  %v1119 = vld [vmem:[%s1 + $0x1f0] sm:$0xff]
  %v1120 = vld [vmem:[%s1 + $0x1f8] sm:$0xff]
  %v1121 = vld [vmem:[%s1 + $0x200] sm:$0xff]
  %v1122 = vld [vmem:[%s1 + $0x208] sm:$0xff]
  %v1123 = vld [vmem:[%s1 + $0x210] sm:$0xff]
  %v1124 = vld [vmem:[%s1 + $0x218] sm:$0xff]
  %v1125 = vld [vmem:[%s1 + $0x220] sm:$0xff]
  %v1126 = vld [vmem:[%s1 + $0x228] sm:$0xff]
  %v1127 = vld [vmem:[%s1 + $0x230] sm:$0xff]
  %v1128 = vld [vmem:[%s1 + $0x238] sm:$0xff]
  %v1129 = vld [vmem:[%s1 + $0x240] sm:$0xff]
  %v1130 = vld [vmem:[%s1 + $0x248] sm:$0xff]
  %v1131 = vld [vmem:[%s1 + $0x250] sm:$0xff]
  %v1132 = vld [vmem:[%s1 + $0x258] sm:$0xff]
  %v1133 = vld [vmem:[%s1 + $0x260] sm:$0xff]
  %v1134 = vld [vmem:[%s1 + $0x268] sm:$0xff]
  %v1135 = vld [vmem:[%s1 + $0x270] sm:$0xff]
  %v1136 = vld [vmem:[%s1 + $0x278] sm:$0xff]
  %1137 = vmatpush.msra.mxu0 %v1072
  %1138 = vmatpush.msra.mxu0 %v1071
  %1139 = vmatpush.msra.mxu0 %v1070
  %1140 = vmatpush.msra.mxu0 %v1069
  %1141 = vmatpush.msra.mxu0 %v1068
  %1142 = vmatpush.msra.mxu0 %v1067
  %1143 = vmatpush.msra.mxu0 %v1066
  %1144 = vmatpush.msra.mxu0 %v1065
  %1145 = vmatpush.msra.mxu0 %v1064
  %1146 = vmatpush.msra.mxu0 %v1063
  %1147 = vmatpush.msra.mxu0 %v1062
  %1148 = vmatpush.msra.mxu0 %v1061
  %1149 = vmatpush.msra.mxu0 %v1060
  %1150 = vmatpush.msra.mxu0 %v1059
  %1151 = vmatpush.msra.mxu0 %v1058
  %1152 = vmatpush.msra.mxu0 %v1057
  %1153 = vmatmul.f32.gmra.mxu0 %v1040
  %v1154 = vpop.f32.mrf.mxu0
  %v1155 = vadd.f32 0.0, %v1154
  %1156 = vdwg.mxu0
  %1157 = vmatpush.msra.mxu0 %v1088
  %1158 = vmatpush.msra.mxu0 %v1087
  %1159 = vmatpush.msra.mxu0 %v1086
  %1160 = vmatpush.msra.mxu0 %v1085
  %1161 = vmatpush.msra.mxu0 %v1084
  %1162 = vmatpush.msra.mxu0 %v1083
  %1163 = vmatpush.msra.mxu0 %v1082
  %1164 = vmatpush.msra.mxu0 %v1081
  %1165 = vmatpush.msra.mxu0 %v1080
  %1166 = vmatpush.msra.mxu0 %v1079
  %1167 = vmatpush.msra.mxu0 %v1078
  %1168 = vmatpush.msra.mxu0 %v1077
  %1169 = vmatpush.msra.mxu0 %v1076
  %1170 = vmatpush.msra.mxu0 %v1075
  %1171 = vmatpush.msra.mxu0 %v1074
  %1172 = vmatpush.msra.mxu0 %v1073
  %1173 = vmatmul.f32.gmra.mxu0 %v1045
  %v1174 = vpop.f32.mrf.mxu0
  %v1175 = vadd.f32 %v1155, %v1174
  %1176 = vdwg.mxu0
  %1177 = vmatpush.msra.mxu0 %v1104
  %1178 = vmatpush.msra.mxu0 %v1103
  %1179 = vmatpush.msra.mxu0 %v1102
  %1180 = vmatpush.msra.mxu0 %v1101
  %1181 = vmatpush.msra.mxu0 %v1100
  %1182 = vmatpush.msra.mxu0 %v1099
  %1183 = vmatpush.msra.mxu0 %v1098
  %1184 = vmatpush.msra.mxu0 %v1097
  %1185 = vmatpush.msra.mxu0 %v1096
  %1186 = vmatpush.msra.mxu0 %v1095
  %1187 = vmatpush.msra.mxu0 %v1094
  %1188 = vmatpush.msra.mxu0 %v1093
  %1189 = vmatpush.msra.mxu0 %v1092
  %1190 = vmatpush.msra.mxu0 %v1091
  %1191 = vmatpush.msra.mxu0 %v1090
  %1192 = vmatpush.msra.mxu0 %v1089
  %1193 = vmatmul.f32.gmra.mxu0 %v1049
  %v1194 = vpop.f32.mrf.mxu0
  %v1195 = vadd.f32 %v1175, %v1194
  %1196 = vdwg.mxu0
  %1197 = vmatpush.msra.mxu0 %v1120
  %1198 = vmatpush.msra.mxu0 %v1119
  %1199 = vmatpush.msra.mxu0 %v1118
  %1200 = vmatpush.msra.mxu0 %v1117
  %1201 = vmatpush.msra.mxu0 %v1116
  %1202 = vmatpush.msra.mxu0 %v1115
  %1203 = vmatpush.msra.mxu0 %v1114
  %1204 = vmatpush.msra.mxu0 %v1113
  %1205 = vmatpush.msra.mxu0 %v1112
  %1206 = vmatpush.msra.mxu0 %v1111
  %1207 = vmatpush.msra.mxu0 %v1110
  %1208 = vmatpush.msra.mxu0 %v1109
  %1209 = vmatpush.msra.mxu0 %v1108
  %1210 = vmatpush.msra.mxu0 %v1107
  %1211 = vmatpush.msra.mxu0 %v1106
  %1212 = vmatpush.msra.mxu0 %v1105
  %1213 = vmatmul.f32.gmra.mxu0 %v1053
  %v1214 = vpop.f32.mrf.mxu0
  %v1215 = vadd.f32 %v1195, %v1214
  %1216 = vdwg.mxu0
  %1217 = vmatpush.msra.mxu0 %v1136
  %1218 = vmatpush.msra.mxu0 %v1135
  %1219 = vmatpush.msra.mxu0 %v1134
  %1220 = vmatpush.msra.mxu0 %v1133
  %1221 = vmatpush.msra.mxu0 %v1132
  %1222 = vmatpush.msra.mxu0 %v1131
  %1223 = vmatpush.msra.mxu0 %v1130
  %1224 = vmatpush.msra.mxu0 %v1129
  %1225 = vmatpush.msra.mxu0 %v1128
  %1226 = vmatpush.msra.mxu0 %v1127
  %1227 = vmatpush.msra.mxu0 %v1126
  %1228 = vmatpush.msra.mxu0 %v1125
  %1229 = vmatpush.msra.mxu0 %v1124
  %1230 = vmatpush.msra.mxu0 %v1123
  %1231 = vmatpush.msra.mxu0 %v1122
  %1232 = vmatpush.msra.mxu0 %v1121
  %1233 = vmatmul.f32.gmra.mxu0 %v1036
  %v1234 = vpop.f32.mrf.mxu0
  %v1235 = vadd.f32 %v1215, %v1234
  %1236 = vdwg.mxu0
  %v1237 = vadd.f32 %v1056, %v1235
  %s1238 = scalar_lea.vmem %s5, 40
  %1239 = vst [vmem:[%s1238] sm:$0xff] %v1237
  %v1240 = vsub.f32 %v1237, %v1036
  %v1241 = vadd.f32 %v1040, %v1240
  %v1242 = vmul.f32 %v1040, %v1240
  %v1243 = vadd.f32 %v1045, %v1242
  %v1244 = vmul.f32 %v1240, 0.5
  %v1245 = vmul.f32 %v1244, %v1240
  %v1246 = vadd.f32 %v1243, %v1245
  %v1247 = vmul.f32 %v1040, %v239
  %v1248 = vadd.f32 %v1049, %v1247
  %v1249 = vmul.f32 %v1244, %v239
  %v1250 = vadd.f32 %v1248, %v1249
  %v1251 = vmul.f32 %v1054, %v1240
  %v1252 = vadd.f32 %v1053, %v1251
  %v1253 = vmul.f32 %v247, %v1240
  %v1254 = vadd.f32 %v1252, %v1253
  %v1255 = vadd.f32 %v1054, %v239
  %s1256 = scalar_lea.vmem %s0, 48
  %v1257 = vld [vmem:[%s1256] sm:$0xff]
  %v1258 = vld [vmem:[%s1] sm:$0xff]
  %v1259 = vld [vmem:[%s1 + $0x8] sm:$0xff]
  %v1260 = vld [vmem:[%s1 + $0x10] sm:$0xff]
  %v1261 = vld [vmem:[%s1 + $0x18] sm:$0xff]
  %v1262 = vld [vmem:[%s1 + $0x20] sm:$0xff]
  %v1263 = vld [vmem:[%s1 + $0x28] sm:$0xff]
  %v1264 = vld [vmem:[%s1 + $0x30] sm:$0xff]
  %v1265 = vld [vmem:[%s1 + $0x38] sm:$0xff]
  %v1266 = vld [vmem:[%s1 + $0x40] sm:$0xff]
  %v1267 = vld [vmem:[%s1 + $0x48] sm:$0xff]
  %v1268 = vld [vmem:[%s1 + $0x50] sm:$0xff]
  %v1269 = vld [vmem:[%s1 + $0x58] sm:$0xff]
  %v1270 = vld [vmem:[%s1 + $0x60] sm:$0xff]
  %v1271 = vld [vmem:[%s1 + $0x68] sm:$0xff]
  %v1272 = vld [vmem:[%s1 + $0x70] sm:$0xff]
  %v1273 = vld [vmem:[%s1 + $0x78] sm:$0xff]
  %v1274 = vld [vmem:[%s1 + $0x80] sm:$0xff]
  %v1275 = vld [vmem:[%s1 + $0x88] sm:$0xff]
  %v1276 = vld [vmem:[%s1 + $0x90] sm:$0xff]
  %v1277 = vld [vmem:[%s1 + $0x98] sm:$0xff]
  %v1278 = vld [vmem:[%s1 + $0xa0] sm:$0xff]
  %v1279 = vld [vmem:[%s1 + $0xa8] sm:$0xff]
  %v1280 = vld [vmem:[%s1 + $0xb0] sm:$0xff]
  %v1281 = vld [vmem:[%s1 + $0xb8] sm:$0xff]
  %v1282 = vld [vmem:[%s1 + $0xc0] sm:$0xff]
  %v1283 = vld [vmem:[%s1 + $0xc8] sm:$0xff]
  %v1284 = vld [vmem:[%s1 + $0xd0] sm:$0xff]
  %v1285 = vld [vmem:[%s1 + $0xd8] sm:$0xff]
  %v1286 = vld [vmem:[%s1 + $0xe0] sm:$0xff]
  %v1287 = vld [vmem:[%s1 + $0xe8] sm:$0xff]
  %v1288 = vld [vmem:[%s1 + $0xf0] sm:$0xff]
  %v1289 = vld [vmem:[%s1 + $0xf8] sm:$0xff]
  %v1290 = vld [vmem:[%s1 + $0x100] sm:$0xff]
  %v1291 = vld [vmem:[%s1 + $0x108] sm:$0xff]
  %v1292 = vld [vmem:[%s1 + $0x110] sm:$0xff]
  %v1293 = vld [vmem:[%s1 + $0x118] sm:$0xff]
  %v1294 = vld [vmem:[%s1 + $0x120] sm:$0xff]
  %v1295 = vld [vmem:[%s1 + $0x128] sm:$0xff]
  %v1296 = vld [vmem:[%s1 + $0x130] sm:$0xff]
  %v1297 = vld [vmem:[%s1 + $0x138] sm:$0xff]
  %v1298 = vld [vmem:[%s1 + $0x140] sm:$0xff]
  %v1299 = vld [vmem:[%s1 + $0x148] sm:$0xff]
  %v1300 = vld [vmem:[%s1 + $0x150] sm:$0xff]
  %v1301 = vld [vmem:[%s1 + $0x158] sm:$0xff]
  %v1302 = vld [vmem:[%s1 + $0x160] sm:$0xff]
  %v1303 = vld [vmem:[%s1 + $0x168] sm:$0xff]
  %v1304 = vld [vmem:[%s1 + $0x170] sm:$0xff]
  %v1305 = vld [vmem:[%s1 + $0x178] sm:$0xff]
  %v1306 = vld [vmem:[%s1 + $0x180] sm:$0xff]
  %v1307 = vld [vmem:[%s1 + $0x188] sm:$0xff]
  %v1308 = vld [vmem:[%s1 + $0x190] sm:$0xff]
  %v1309 = vld [vmem:[%s1 + $0x198] sm:$0xff]
  %v1310 = vld [vmem:[%s1 + $0x1a0] sm:$0xff]
  %v1311 = vld [vmem:[%s1 + $0x1a8] sm:$0xff]
  %v1312 = vld [vmem:[%s1 + $0x1b0] sm:$0xff]
  %v1313 = vld [vmem:[%s1 + $0x1b8] sm:$0xff]
  %v1314 = vld [vmem:[%s1 + $0x1c0] sm:$0xff]
  %v1315 = vld [vmem:[%s1 + $0x1c8] sm:$0xff]
  %v1316 = vld [vmem:[%s1 + $0x1d0] sm:$0xff]
  %v1317 = vld [vmem:[%s1 + $0x1d8] sm:$0xff]
  %v1318 = vld [vmem:[%s1 + $0x1e0] sm:$0xff]
  %v1319 = vld [vmem:[%s1 + $0x1e8] sm:$0xff]
  %v1320 = vld [vmem:[%s1 + $0x1f0] sm:$0xff]
  %v1321 = vld [vmem:[%s1 + $0x1f8] sm:$0xff]
  %v1322 = vld [vmem:[%s1 + $0x200] sm:$0xff]
  %v1323 = vld [vmem:[%s1 + $0x208] sm:$0xff]
  %v1324 = vld [vmem:[%s1 + $0x210] sm:$0xff]
  %v1325 = vld [vmem:[%s1 + $0x218] sm:$0xff]
  %v1326 = vld [vmem:[%s1 + $0x220] sm:$0xff]
  %v1327 = vld [vmem:[%s1 + $0x228] sm:$0xff]
  %v1328 = vld [vmem:[%s1 + $0x230] sm:$0xff]
  %v1329 = vld [vmem:[%s1 + $0x238] sm:$0xff]
  %v1330 = vld [vmem:[%s1 + $0x240] sm:$0xff]
  %v1331 = vld [vmem:[%s1 + $0x248] sm:$0xff]
  %v1332 = vld [vmem:[%s1 + $0x250] sm:$0xff]
  %v1333 = vld [vmem:[%s1 + $0x258] sm:$0xff]
  %v1334 = vld [vmem:[%s1 + $0x260] sm:$0xff]
  %v1335 = vld [vmem:[%s1 + $0x268] sm:$0xff]
  %v1336 = vld [vmem:[%s1 + $0x270] sm:$0xff]
  %v1337 = vld [vmem:[%s1 + $0x278] sm:$0xff]
  %1338 = vmatpush.msra.mxu0 %v1273
  %1339 = vmatpush.msra.mxu0 %v1272
  %1340 = vmatpush.msra.mxu0 %v1271
  %1341 = vmatpush.msra.mxu0 %v1270
  %1342 = vmatpush.msra.mxu0 %v1269
  %1343 = vmatpush.msra.mxu0 %v1268
  %1344 = vmatpush.msra.mxu0 %v1267
  %1345 = vmatpush.msra.mxu0 %v1266
  %1346 = vmatpush.msra.mxu0 %v1265
  %1347 = vmatpush.msra.mxu0 %v1264
  %1348 = vmatpush.msra.mxu0 %v1263
  %1349 = vmatpush.msra.mxu0 %v1262
  %1350 = vmatpush.msra.mxu0 %v1261
  %1351 = vmatpush.msra.mxu0 %v1260
  %1352 = vmatpush.msra.mxu0 %v1259
  %1353 = vmatpush.msra.mxu0 %v1258
  %1354 = vmatmul.f32.gmra.mxu0 %v1241
  %v1355 = vpop.f32.mrf.mxu0
  %v1356 = vadd.f32 0.0, %v1355
  %1357 = vdwg.mxu0
  %1358 = vmatpush.msra.mxu0 %v1289
  %1359 = vmatpush.msra.mxu0 %v1288
  %1360 = vmatpush.msra.mxu0 %v1287
  %1361 = vmatpush.msra.mxu0 %v1286
  %1362 = vmatpush.msra.mxu0 %v1285
  %1363 = vmatpush.msra.mxu0 %v1284
  %1364 = vmatpush.msra.mxu0 %v1283
  %1365 = vmatpush.msra.mxu0 %v1282
  %1366 = vmatpush.msra.mxu0 %v1281
  %1367 = vmatpush.msra.mxu0 %v1280
  %1368 = vmatpush.msra.mxu0 %v1279
  %1369 = vmatpush.msra.mxu0 %v1278
  %1370 = vmatpush.msra.mxu0 %v1277
  %1371 = vmatpush.msra.mxu0 %v1276
  %1372 = vmatpush.msra.mxu0 %v1275
  %1373 = vmatpush.msra.mxu0 %v1274
  %1374 = vmatmul.f32.gmra.mxu0 %v1246
  %v1375 = vpop.f32.mrf.mxu0
  %v1376 = vadd.f32 %v1356, %v1375
  %1377 = vdwg.mxu0
  %1378 = vmatpush.msra.mxu0 %v1305
  %1379 = vmatpush.msra.mxu0 %v1304
  %1380 = vmatpush.msra.mxu0 %v1303
  %1381 = vmatpush.msra.mxu0 %v1302
  %1382 = vmatpush.msra.mxu0 %v1301
  %1383 = vmatpush.msra.mxu0 %v1300
  %1384 = vmatpush.msra.mxu0 %v1299
  %1385 = vmatpush.msra.mxu0 %v1298
  %1386 = vmatpush.msra.mxu0 %v1297
  %1387 = vmatpush.msra.mxu0 %v1296
  %1388 = vmatpush.msra.mxu0 %v1295
  %1389 = vmatpush.msra.mxu0 %v1294
  %1390 = vmatpush.msra.mxu0 %v1293
  %1391 = vmatpush.msra.mxu0 %v1292
  %1392 = vmatpush.msra.mxu0 %v1291
  %1393 = vmatpush.msra.mxu0 %v1290
  %1394 = vmatmul.f32.gmra.mxu0 %v1250
  %v1395 = vpop.f32.mrf.mxu0
  %v1396 = vadd.f32 %v1376, %v1395
  %1397 = vdwg.mxu0
  %1398 = vmatpush.msra.mxu0 %v1321
  %1399 = vmatpush.msra.mxu0 %v1320
  %1400 = vmatpush.msra.mxu0 %v1319
  %1401 = vmatpush.msra.mxu0 %v1318
  %1402 = vmatpush.msra.mxu0 %v1317
  %1403 = vmatpush.msra.mxu0 %v1316
  %1404 = vmatpush.msra.mxu0 %v1315
  %1405 = vmatpush.msra.mxu0 %v1314
  %1406 = vmatpush.msra.mxu0 %v1313
  %1407 = vmatpush.msra.mxu0 %v1312
  %1408 = vmatpush.msra.mxu0 %v1311
  %1409 = vmatpush.msra.mxu0 %v1310
  %1410 = vmatpush.msra.mxu0 %v1309
  %1411 = vmatpush.msra.mxu0 %v1308
  %1412 = vmatpush.msra.mxu0 %v1307
  %1413 = vmatpush.msra.mxu0 %v1306
  %1414 = vmatmul.f32.gmra.mxu0 %v1254
  %v1415 = vpop.f32.mrf.mxu0
  %v1416 = vadd.f32 %v1396, %v1415
  %1417 = vdwg.mxu0
  %1418 = vmatpush.msra.mxu0 %v1337
  %1419 = vmatpush.msra.mxu0 %v1336
  %1420 = vmatpush.msra.mxu0 %v1335
  %1421 = vmatpush.msra.mxu0 %v1334
  %1422 = vmatpush.msra.mxu0 %v1333
  %1423 = vmatpush.msra.mxu0 %v1332
  %1424 = vmatpush.msra.mxu0 %v1331
  %1425 = vmatpush.msra.mxu0 %v1330
  %1426 = vmatpush.msra.mxu0 %v1329
  %1427 = vmatpush.msra.mxu0 %v1328
  %1428 = vmatpush.msra.mxu0 %v1327
  %1429 = vmatpush.msra.mxu0 %v1326
  %1430 = vmatpush.msra.mxu0 %v1325
  %1431 = vmatpush.msra.mxu0 %v1324
  %1432 = vmatpush.msra.mxu0 %v1323
  %1433 = vmatpush.msra.mxu0 %v1322
  %1434 = vmatmul.f32.gmra.mxu0 %v1237
  %v1435 = vpop.f32.mrf.mxu0
  %v1436 = vadd.f32 %v1416, %v1435
  %1437 = vdwg.mxu0
  %v1438 = vadd.f32 %v1257, %v1436
  %s1439 = scalar_lea.vmem %s5, 48
  %1440 = vst [vmem:[%s1439] sm:$0xff] %v1438
  %v1441 = vsub.f32 %v1438, %v1237
  %v1442 = vadd.f32 %v1241, %v1441
  %v1443 = vmul.f32 %v1241, %v1441
  %v1444 = vadd.f32 %v1246, %v1443
  %v1445 = vmul.f32 %v1441, 0.5
  %v1446 = vmul.f32 %v1445, %v1441
  %v1447 = vadd.f32 %v1444, %v1446
  %v1448 = vmul.f32 %v1241, %v239
  %v1449 = vadd.f32 %v1250, %v1448
  %v1450 = vmul.f32 %v1445, %v239
  %v1451 = vadd.f32 %v1449, %v1450
  %v1452 = vmul.f32 %v1255, %v1441
  %v1453 = vadd.f32 %v1254, %v1452
  %v1454 = vmul.f32 %v247, %v1441
  %v1455 = vadd.f32 %v1453, %v1454
  %v1456 = vadd.f32 %v1255, %v239
  %s1457 = scalar_lea.vmem %s0, 56
  %v1458 = vld [vmem:[%s1457] sm:$0xff]
  %v1459 = vld [vmem:[%s1] sm:$0xff]
  %v1460 = vld [vmem:[%s1 + $0x8] sm:$0xff]
  %v1461 = vld [vmem:[%s1 + $0x10] sm:$0xff]
  %v1462 = vld [vmem:[%s1 + $0x18] sm:$0xff]
  %v1463 = vld [vmem:[%s1 + $0x20] sm:$0xff]
  %v1464 = vld [vmem:[%s1 + $0x28] sm:$0xff]
  %v1465 = vld [vmem:[%s1 + $0x30] sm:$0xff]
  %v1466 = vld [vmem:[%s1 + $0x38] sm:$0xff]
  %v1467 = vld [vmem:[%s1 + $0x40] sm:$0xff]
  %v1468 = vld [vmem:[%s1 + $0x48] sm:$0xff]
  %v1469 = vld [vmem:[%s1 + $0x50] sm:$0xff]
  %v1470 = vld [vmem:[%s1 + $0x58] sm:$0xff]
  %v1471 = vld [vmem:[%s1 + $0x60] sm:$0xff]
  %v1472 = vld [vmem:[%s1 + $0x68] sm:$0xff]
  %v1473 = vld [vmem:[%s1 + $0x70] sm:$0xff]
  %v1474 = vld [vmem:[%s1 + $0x78] sm:$0xff]
  %v1475 = vld [vmem:[%s1 + $0x80] sm:$0xff]
  %v1476 = vld [vmem:[%s1 + $0x88] sm:$0xff]
  %v1477 = vld [vmem:[%s1 + $0x90] sm:$0xff]
  %v1478 = vld [vmem:[%s1 + $0x98] sm:$0xff]
  %v1479 = vld [vmem:[%s1 + $0xa0] sm:$0xff]
  %v1480 = vld [vmem:[%s1 + $0xa8] sm:$0xff]
  %v1481 = vld [vmem:[%s1 + $0xb0] sm:$0xff]
  %v1482 = vld [vmem:[%s1 + $0xb8] sm:$0xff]
  %v1483 = vld [vmem:[%s1 + $0xc0] sm:$0xff]
  %v1484 = vld [vmem:[%s1 + $0xc8] sm:$0xff]
  %v1485 = vld [vmem:[%s1 + $0xd0] sm:$0xff]
  %v1486 = vld [vmem:[%s1 + $0xd8] sm:$0xff]
  %v1487 = vld [vmem:[%s1 + $0xe0] sm:$0xff]
  %v1488 = vld [vmem:[%s1 + $0xe8] sm:$0xff]
  %v1489 = vld [vmem:[%s1 + $0xf0] sm:$0xff]
  %v1490 = vld [vmem:[%s1 + $0xf8] sm:$0xff]
  %v1491 = vld [vmem:[%s1 + $0x100] sm:$0xff]
  %v1492 = vld [vmem:[%s1 + $0x108] sm:$0xff]
  %v1493 = vld [vmem:[%s1 + $0x110] sm:$0xff]
  %v1494 = vld [vmem:[%s1 + $0x118] sm:$0xff]
  %v1495 = vld [vmem:[%s1 + $0x120] sm:$0xff]
  %v1496 = vld [vmem:[%s1 + $0x128] sm:$0xff]
  %v1497 = vld [vmem:[%s1 + $0x130] sm:$0xff]
  %v1498 = vld [vmem:[%s1 + $0x138] sm:$0xff]
  %v1499 = vld [vmem:[%s1 + $0x140] sm:$0xff]
  %v1500 = vld [vmem:[%s1 + $0x148] sm:$0xff]
  %v1501 = vld [vmem:[%s1 + $0x150] sm:$0xff]
  %v1502 = vld [vmem:[%s1 + $0x158] sm:$0xff]
  %v1503 = vld [vmem:[%s1 + $0x160] sm:$0xff]
  %v1504 = vld [vmem:[%s1 + $0x168] sm:$0xff]
  %v1505 = vld [vmem:[%s1 + $0x170] sm:$0xff]
  %v1506 = vld [vmem:[%s1 + $0x178] sm:$0xff]
  %v1507 = vld [vmem:[%s1 + $0x180] sm:$0xff]
  %v1508 = vld [vmem:[%s1 + $0x188] sm:$0xff]
  %v1509 = vld [vmem:[%s1 + $0x190] sm:$0xff]
  %v1510 = vld [vmem:[%s1 + $0x198] sm:$0xff]
  %v1511 = vld [vmem:[%s1 + $0x1a0] sm:$0xff]
  %v1512 = vld [vmem:[%s1 + $0x1a8] sm:$0xff]
  %v1513 = vld [vmem:[%s1 + $0x1b0] sm:$0xff]
  %v1514 = vld [vmem:[%s1 + $0x1b8] sm:$0xff]
  %v1515 = vld [vmem:[%s1 + $0x1c0] sm:$0xff]
  %v1516 = vld [vmem:[%s1 + $0x1c8] sm:$0xff]
  %v1517 = vld [vmem:[%s1 + $0x1d0] sm:$0xff]
  %v1518 = vld [vmem:[%s1 + $0x1d8] sm:$0xff]
  %v1519 = vld [vmem:[%s1 + $0x1e0] sm:$0xff]
  %v1520 = vld [vmem:[%s1 + $0x1e8] sm:$0xff]
  %v1521 = vld [vmem:[%s1 + $0x1f0] sm:$0xff]
  %v1522 = vld [vmem:[%s1 + $0x1f8] sm:$0xff]
  %v1523 = vld [vmem:[%s1 + $0x200] sm:$0xff]
  %v1524 = vld [vmem:[%s1 + $0x208] sm:$0xff]
  %v1525 = vld [vmem:[%s1 + $0x210] sm:$0xff]
  %v1526 = vld [vmem:[%s1 + $0x218] sm:$0xff]
  %v1527 = vld [vmem:[%s1 + $0x220] sm:$0xff]
  %v1528 = vld [vmem:[%s1 + $0x228] sm:$0xff]
  %v1529 = vld [vmem:[%s1 + $0x230] sm:$0xff]
  %v1530 = vld [vmem:[%s1 + $0x238] sm:$0xff]
  %v1531 = vld [vmem:[%s1 + $0x240] sm:$0xff]
  %v1532 = vld [vmem:[%s1 + $0x248] sm:$0xff]
  %v1533 = vld [vmem:[%s1 + $0x250] sm:$0xff]
  %v1534 = vld [vmem:[%s1 + $0x258] sm:$0xff]
  %v1535 = vld [vmem:[%s1 + $0x260] sm:$0xff]
  %v1536 = vld [vmem:[%s1 + $0x268] sm:$0xff]
  %v1537 = vld [vmem:[%s1 + $0x270] sm:$0xff]
  %v1538 = vld [vmem:[%s1 + $0x278] sm:$0xff]
  %1539 = vmatpush.msra.mxu0 %v1474
  %1540 = vmatpush.msra.mxu0 %v1473
  %1541 = vmatpush.msra.mxu0 %v1472
  %1542 = vmatpush.msra.mxu0 %v1471
  %1543 = vmatpush.msra.mxu0 %v1470
  %1544 = vmatpush.msra.mxu0 %v1469
  %1545 = vmatpush.msra.mxu0 %v1468
  %1546 = vmatpush.msra.mxu0 %v1467
  %1547 = vmatpush.msra.mxu0 %v1466
  %1548 = vmatpush.msra.mxu0 %v1465
  %1549 = vmatpush.msra.mxu0 %v1464
  %1550 = vmatpush.msra.mxu0 %v1463
  %1551 = vmatpush.msra.mxu0 %v1462
  %1552 = vmatpush.msra.mxu0 %v1461
  %1553 = vmatpush.msra.mxu0 %v1460
  %1554 = vmatpush.msra.mxu0 %v1459
  %1555 = vmatmul.f32.gmra.mxu0 %v1442
  %v1556 = vpop.f32.mrf.mxu0
  %v1557 = vadd.f32 0.0, %v1556
  %1558 = vdwg.mxu0
  %1559 = vmatpush.msra.mxu0 %v1490
  %1560 = vmatpush.msra.mxu0 %v1489
  %1561 = vmatpush.msra.mxu0 %v1488
  %1562 = vmatpush.msra.mxu0 %v1487
  %1563 = vmatpush.msra.mxu0 %v1486
  %1564 = vmatpush.msra.mxu0 %v1485
  %1565 = vmatpush.msra.mxu0 %v1484
  %1566 = vmatpush.msra.mxu0 %v1483
  %1567 = vmatpush.msra.mxu0 %v1482
  %1568 = vmatpush.msra.mxu0 %v1481
  %1569 = vmatpush.msra.mxu0 %v1480
  %1570 = vmatpush.msra.mxu0 %v1479
  %1571 = vmatpush.msra.mxu0 %v1478
  %1572 = vmatpush.msra.mxu0 %v1477
  %1573 = vmatpush.msra.mxu0 %v1476
  %1574 = vmatpush.msra.mxu0 %v1475
  %1575 = vmatmul.f32.gmra.mxu0 %v1447
  %v1576 = vpop.f32.mrf.mxu0
  %v1577 = vadd.f32 %v1557, %v1576
  %1578 = vdwg.mxu0
  %1579 = vmatpush.msra.mxu0 %v1506
  %1580 = vmatpush.msra.mxu0 %v1505
  %1581 = vmatpush.msra.mxu0 %v1504
  %1582 = vmatpush.msra.mxu0 %v1503
  %1583 = vmatpush.msra.mxu0 %v1502
  %1584 = vmatpush.msra.mxu0 %v1501
  %1585 = vmatpush.msra.mxu0 %v1500
  %1586 = vmatpush.msra.mxu0 %v1499
  %1587 = vmatpush.msra.mxu0 %v1498
  %1588 = vmatpush.msra.mxu0 %v1497
  %1589 = vmatpush.msra.mxu0 %v1496
  %1590 = vmatpush.msra.mxu0 %v1495
  %1591 = vmatpush.msra.mxu0 %v1494
  %1592 = vmatpush.msra.mxu0 %v1493
  %1593 = vmatpush.msra.mxu0 %v1492
  %1594 = vmatpush.msra.mxu0 %v1491
  %1595 = vmatmul.f32.gmra.mxu0 %v1451
  %v1596 = vpop.f32.mrf.mxu0
  %v1597 = vadd.f32 %v1577, %v1596
  %1598 = vdwg.mxu0
  %1599 = vmatpush.msra.mxu0 %v1522
  %1600 = vmatpush.msra.mxu0 %v1521
  %1601 = vmatpush.msra.mxu0 %v1520
  %1602 = vmatpush.msra.mxu0 %v1519
  %1603 = vmatpush.msra.mxu0 %v1518
  %1604 = vmatpush.msra.mxu0 %v1517
  %1605 = vmatpush.msra.mxu0 %v1516
  %1606 = vmatpush.msra.mxu0 %v1515
  %1607 = vmatpush.msra.mxu0 %v1514
  %1608 = vmatpush.msra.mxu0 %v1513
  %1609 = vmatpush.msra.mxu0 %v1512
  %1610 = vmatpush.msra.mxu0 %v1511
  %1611 = vmatpush.msra.mxu0 %v1510
  %1612 = vmatpush.msra.mxu0 %v1509
  %1613 = vmatpush.msra.mxu0 %v1508
  %1614 = vmatpush.msra.mxu0 %v1507
  %1615 = vmatmul.f32.gmra.mxu0 %v1455
  %v1616 = vpop.f32.mrf.mxu0
  %v1617 = vadd.f32 %v1597, %v1616
  %1618 = vdwg.mxu0
  %1619 = vmatpush.msra.mxu0 %v1538
  %1620 = vmatpush.msra.mxu0 %v1537
  %1621 = vmatpush.msra.mxu0 %v1536
  %1622 = vmatpush.msra.mxu0 %v1535
  %1623 = vmatpush.msra.mxu0 %v1534
  %1624 = vmatpush.msra.mxu0 %v1533
  %1625 = vmatpush.msra.mxu0 %v1532
  %1626 = vmatpush.msra.mxu0 %v1531
  %1627 = vmatpush.msra.mxu0 %v1530
  %1628 = vmatpush.msra.mxu0 %v1529
  %1629 = vmatpush.msra.mxu0 %v1528
  %1630 = vmatpush.msra.mxu0 %v1527
  %1631 = vmatpush.msra.mxu0 %v1526
  %1632 = vmatpush.msra.mxu0 %v1525
  %1633 = vmatpush.msra.mxu0 %v1524
  %1634 = vmatpush.msra.mxu0 %v1523
  %1635 = vmatmul.f32.gmra.mxu0 %v1438
  %v1636 = vpop.f32.mrf.mxu0
  %v1637 = vadd.f32 %v1617, %v1636
  %1638 = vdwg.mxu0
  %v1639 = vadd.f32 %v1458, %v1637
  %s1640 = scalar_lea.vmem %s5, 56
  %1641 = vst [vmem:[%s1640] sm:$0xff] %v1639
  %v1642 = vsub.f32 %v1639, %v1438
  %v1643 = vadd.f32 %v1442, %v1642
  %v1644 = vmul.f32 %v1442, %v1642
  %v1645 = vadd.f32 %v1447, %v1644
  %v1646 = vmul.f32 %v1642, 0.5
  %v1647 = vmul.f32 %v1646, %v1642
  %v1648 = vadd.f32 %v1645, %v1647
  %v1649 = vmul.f32 %v1442, %v239
  %v1650 = vadd.f32 %v1451, %v1649
  %v1651 = vmul.f32 %v1646, %v239
  %v1652 = vadd.f32 %v1650, %v1651
  %v1653 = vmul.f32 %v1456, %v1642
  %v1654 = vadd.f32 %v1455, %v1653
  %v1655 = vmul.f32 %v247, %v1642
  %v1656 = vadd.f32 %v1654, %v1655
  %1657 = vst [vmem:[%s6] sm:$0xff] %v1643
  %1658 = vst [vmem:[%s6 + $0x8] sm:$0xff] %v1648
  %1659 = vst [vmem:[%s6 + $0x10] sm:$0xff] %v1652
  %1660 = vst [vmem:[%s6 + $0x18] sm:$0xff] %v1656
  %1661 = vst [vmem:[%s6 + $0x20] sm:$0xff] %v1639
  // Predicated region
  $region26: #{recurrent_sig_sequence.1} parent=0 // pred_check
    _
  $region27: #{recurrent_sig_sequence.1} parent=0 // pred_check_branch
    %1663 = sbr.rel (0) target = $region29
  $region28: #{recurrent_sig_sequence.1} parent=0 // pred_region
    _
  $region29: #{recurrent_sig_sequence.1} parent=0 // pred_fallthru
    _
  // Predicated region
  $region30: #{recurrent_sig_sequence.1} parent=0 // pred_check
    _
  $region31: #{recurrent_sig_sequence.1} parent=0 // pred_check_branch
    %1665 = sbr.rel (0) target = $region33
  $region32: #{recurrent_sig_sequence.1} parent=0 // pred_region
    _
  $region33: #{recurrent_sig_sequence.1} parent=0 // pred_fallthru
    _
  // Predicated region
  $region34: #{recurrent_sig_sequence.1} parent=0 // pred_check
    _
  $region35: #{recurrent_sig_sequence.1} parent=0 // pred_check_branch
    %1667 = sbr.rel (0) target = $region37
  $region36: #{recurrent_sig_sequence.1} parent=0 // pred_region
    _
  $region37: #{recurrent_sig_sequence.1} parent=0 // pred_fallthru
    _
  // Predicated region
  $region38: #{recurrent_sig_sequence.1} parent=0 // pred_check
    _
  $region39: #{recurrent_sig_sequence.1} parent=0 // pred_check_branch
    %1669 = sbr.rel (0) target = $region41
  $region40: #{recurrent_sig_sequence.1} parent=0 // pred_region
    _
  $region41: #{recurrent_sig_sequence.1} parent=0 // pred_fallthru
    _

</llo_original>
